<compile_context>
chip_gen: v6e
topology: v6e:2x2x1
jax: 0.10.0
libtpu: 0.0.40
codegen_flags: <defaults>
</compile_context>

<pallas_src>
import functools

import jax
import jax.numpy as jnp
from jax.experimental import pallas as pl
from jax.experimental.pallas import tpu as pltpu

D_IN = 32
D_HID = 256
D_OUT = 3


def _leaky_relu(x, slope=0.2):
    return jnp.where(x > 0, x, slope * x)


def _round_up(n, m):
    return ((n + m - 1) // m) * m


def decoder_albedo_kernel(
    x3_ref, x2_ref, x1_ref, x0_ref,
    w0_ref, b0_ref, w1_ref, b1_ref, w2_ref, b2_ref, w3_ref, b3_ref,
    o_ref,
    *, precision=None,
):
    f32 = jnp.float32
    wdt = w1_ref.dtype  # matmul input dtype (f32 or bf16); accumulation is always f32

    # layer 0: (tile_n, 32) @ (32, 256) + b0 + x2, LeakyReLU(0.2)
    h = jnp.dot(x3_ref[...], w0_ref[...], preferred_element_type=f32, precision=precision)
    h = _leaky_relu(h + b0_ref[...].astype(f32) + x2_ref[...].astype(f32))

    # layer 1: (tile_n, 256) @ (256, 256) + b1 + x1, LeakyReLU(0.2)
    h = jnp.dot(h.astype(wdt), w1_ref[...], preferred_element_type=f32, precision=precision)
    h = _leaky_relu(h + b1_ref[...].astype(f32) + x1_ref[...].astype(f32))

    # layer 2: (tile_n, 256) @ (256, 256) + b2 + x0, LeakyReLU(0.2)
    h = jnp.dot(h.astype(wdt), w2_ref[...], preferred_element_type=f32, precision=precision)
    h = _leaky_relu(h + b2_ref[...].astype(f32) + x0_ref[...].astype(f32))

    # layer 3: (tile_n, 256) @ (256, 3) + b3   (no activation)
    out = jnp.dot(h.astype(wdt), w3_ref[...], preferred_element_type=f32, precision=precision)
    o_ref[...] = (out + b3_ref[...].astype(f32)).astype(o_ref.dtype)


def decoder_albedo(x0, x1, x2, x3, params, *, tile_n=None,
                   vmem_limit_bytes=48 * 1024 * 1024, precision=None):
    """x3: (N, 32); x0, x1, x2: (N, 256). Returns (N, 3) in x3.dtype.

    Inputs/weights may be f32 or bf16; accumulation and activations run in f32.
    `precision` is forwarded to the in-kernel matmuls (the kernel is memory-bound,
    so extra MXU passes from Precision.HIGHEST are hidden).
    """
    N = x3.shape[0]
    result_dtype = x3.dtype
    w0, b0, w1, b1, w2, b2, w3, b3 = params

    # --- row-tile selection -------------------------------------------------
    # Largest row tile that comfortably fits VMEM.  At tile_n=1024, double-buffered
    # per-tile f32 inputs are ~6.3 MB plus ~1.3 MB of weights -> well inside the limit
    # on v5e/v6e/v7x.  Multiple of 16 so bf16 sublane packing is always clean.
    if tile_n is None:
        tile_n = min(1024, _round_up(N, 16))
    tile_n = max(16, (tile_n // 16) * 16)

    n_pad = _round_up(N, tile_n)
    if n_pad != N:
        pad = ((0, n_pad - N), (0, 0))
        x3 = jnp.pad(x3, pad)
        x2 = jnp.pad(x2, pad)
        x1 = jnp.pad(x1, pad)
        x0 = jnp.pad(x0, pad)

    grid = (n_pad // tile_n,)

    row_spec_in = pl.BlockSpec((tile_n, D_IN), lambda i: (i, 0))
    row_spec_hid = pl.BlockSpec((tile_n, D_HID), lambda i: (i, 0))
    # Output kept at 3 lanes on purpose: write traffic (~12 B/row) is negligible
    # next to the ~3.2 KB/row of reads, so lane-padding would only add traffic.
    row_spec_out = pl.BlockSpec((tile_n, D_OUT), lambda i: (i, 0))

    def const_spec(arr):
        # Constant index_map -> block is fetched once and stays VMEM-resident
        # across the whole grid (weights/biases).
        return pl.BlockSpec(arr.shape, lambda i: (0, 0))

    out = pl.pallas_call(
        functools.partial(decoder_albedo_kernel, precision=precision),
        # f32 accumulator output; cast to the input dtype outside (output is tiny).
        out_shape=jax.ShapeDtypeStruct((n_pad, D_OUT), jnp.float32),
        grid_spec=pltpu.PrefetchScalarGridSpec(
            num_scalar_prefetch=0,
            grid=grid,
            in_specs=[
                row_spec_in,    # x3
                row_spec_hid,   # x2
                row_spec_hid,   # x1
                row_spec_hid,   # x0
                const_spec(w0), const_spec(b0),
                const_spec(w1), const_spec(b1),
                const_spec(w2), const_spec(b2),
                const_spec(w3), const_spec(b3),
            ],
            out_specs=row_spec_out,
        ),
        compiler_params=pltpu.CompilerParams(
            dimension_semantics=("parallel",),
            vmem_limit_bytes=vmem_limit_bytes,
        ),
    )(x3, x2, x1, x0, w0, b0, w1, b1, w2, b2, w3, b3)

    out = out[:N] if n_pad != N else out
    return out.astype(result_dtype)


def init_params(key, dtype=jnp.float32):
    """Deterministic params mimicking nn.Linear init (uniform +-1/sqrt(fan_in)).

    Weights stored transposed as (in_features, out_features); biases as (1, out_features)."""
    dims = [(D_IN, D_HID), (D_HID, D_HID), (D_HID, D_HID), (D_HID, D_OUT)]
    params = []
    for fan_in, fan_out in dims:
        key, kw, kb = jax.random.split(key, 3)
        bound = 1.0 / (fan_in ** 0.5)
        w = jax.random.uniform(kw, (fan_in, fan_out), jnp.float32, -bound, bound)
        b = jax.random.uniform(kb, (1, fan_out), jnp.float32, -bound, bound)
        params.extend([w.astype(dtype), b.astype(dtype)])
    return tuple(params)


def decoder_albedo_ref(x0, x1, x2, x3, params):
    """Pure-JAX f32 reference (same math as the PyTorch forward)."""
    w0, b0, w1, b1, w2, b2, w3, b3 = (p.astype(jnp.float32) for p in params)
    x0, x1, x2, x3 = (a.astype(jnp.float32) for a in (x0, x1, x2, x3))
    h = _leaky_relu(x3 @ w0 + b0 + x2)
    h = _leaky_relu(h @ w1 + b1 + x1)
    h = _leaky_relu(h @ w2 + b2 + x0)
    return h @ w3 + b3


if __name__ == "__main__":
    key = jax.random.PRNGKey(0)
    kp, k0, k1, k2, k3 = jax.random.split(key, 5)

    params = init_params(kp)

    N = 256  # number of points (small demo shape)
    x3 = jax.random.normal(k3, (N, D_IN), jnp.float32)   # feature-vector input
    x2 = jax.random.normal(k2, (N, D_HID), jnp.float32)  # skip connections
    x1 = jax.random.normal(k1, (N, D_HID), jnp.float32)
    x0 = jax.random.normal(k0, (N, D_HID), jnp.float32)

    ref = decoder_albedo_ref(x0, x1, x2, x3, params)

    # 1) f32, auto row tile (single grid step at this small N)
    out = jax.block_until_ready(decoder_albedo(x0, x1, x2, x3, params))
    assert out.shape == (N, D_OUT)
    assert jnp.allclose(out, ref, atol=1e-4, rtol=1e-4), "f32 auto-tile mismatch"

    # 2) f32, forced small tile -> multi-step grid (exercises BlockSpec indexing)
    out2 = jax.block_until_ready(decoder_albedo(x0, x1, x2, x3, params, tile_n=128))
    assert jnp.allclose(out2, ref, atol=1e-4, rtol=1e-4), "f32 tiled mismatch"

    # 3) bf16 skips + weights (halves HBM read traffic; f32 accumulation in-kernel)
    bf16 = jnp.bfloat16
    params_bf16 = tuple(p.astype(bf16) for p in params)
    out3 = decoder_albedo(x0.astype(bf16), x1.astype(bf16), x2.astype(bf16),
                          x3.astype(bf16), params_bf16)
    out3 = jax.block_until_ready(out3)
    assert out3.shape == (N, D_OUT) and out3.dtype == bf16
    assert jnp.allclose(out3.astype(jnp.float32), ref, atol=2e-1, rtol=1e-1), \
        "bf16 path mismatch"

    print("KERNEL_OK")
</pallas_src>

<mosaic_0001>
module attributes {stable_mosaic.version = 11 : i64} {
  func.func @decoder_albedo_kernel(%arg0: i32, %arg1: memref<256x32xf32, #tpu.memory_space<vmem>>, %arg2: memref<256x256xf32, #tpu.memory_space<vmem>>, %arg3: memref<256x256xf32, #tpu.memory_space<vmem>>, %arg4: memref<256x256xf32, #tpu.memory_space<vmem>>, %arg5: memref<32x256xf32, #tpu.memory_space<vmem>>, %arg6: memref<1x256xf32, #tpu.memory_space<vmem>>, %arg7: memref<256x256xf32, #tpu.memory_space<vmem>>, %arg8: memref<1x256xf32, #tpu.memory_space<vmem>>, %arg9: memref<256x256xf32, #tpu.memory_space<vmem>>, %arg10: memref<1x256xf32, #tpu.memory_space<vmem>>, %arg11: memref<256x3xf32, #tpu.memory_space<vmem>>, %arg12: memref<1x3xf32, #tpu.memory_space<vmem>>, %arg13: memref<256x3xf32, #tpu.memory_space<vmem>>) attributes {dimension_semantics = [#tpu.dimension_semantics<parallel>], iteration_bounds = array<i64: 1>, scalar_prefetch = 0 : i64, scratch_operands = 0 : i64, tpu.core_type = #tpu.core_type<tc>, window_params = [{transform_indices = @transform_0, window_bounds = array<i64: 256, 32>}, {transform_indices = @transform_1, window_bounds = array<i64: 256, 256>}, {transform_indices = @transform_2, window_bounds = array<i64: 256, 256>}, {transform_indices = @transform_3, window_bounds = array<i64: 256, 256>}, {pipeline_mode = #tpu.pipeline_mode<synchronous>, transform_indices = @transform_4, window_bounds = array<i64: 32, 256>}, {pipeline_mode = #tpu.pipeline_mode<synchronous>, transform_indices = @transform_5, window_bounds = array<i64: 1, 256>}, {pipeline_mode = #tpu.pipeline_mode<synchronous>, transform_indices = @transform_6, window_bounds = array<i64: 256, 256>}, {pipeline_mode = #tpu.pipeline_mode<synchronous>, transform_indices = @transform_7, window_bounds = array<i64: 1, 256>}, {pipeline_mode = #tpu.pipeline_mode<synchronous>, transform_indices = @transform_8, window_bounds = array<i64: 256, 256>}, {pipeline_mode = #tpu.pipeline_mode<synchronous>, transform_indices = @transform_9, window_bounds = array<i64: 1, 256>}, {pipeline_mode = #tpu.pipeline_mode<synchronous>, transform_indices = @transform_10, window_bounds = array<i64: 256, 3>}, {pipeline_mode = #tpu.pipeline_mode<synchronous>, transform_indices = @transform_11, window_bounds = array<i64: 1, 3>}, {transform_indices = @transform_12, window_bounds = array<i64: 256, 3>}]} {
    %c0 = arith.constant 0 : index
    %c0_0 = arith.constant 0 : index
    %0 = vector.load %arg1[%c0, %c0_0] : memref<256x32xf32, #tpu.memory_space<vmem>>, vector<256x32xf32>
    %c0_1 = arith.constant 0 : index
    %c0_2 = arith.constant 0 : index
    %1 = vector.load %arg5[%c0_1, %c0_2] : memref<32x256xf32, #tpu.memory_space<vmem>>, vector<32x256xf32>
    %cst = arith.constant dense<0.000000e+00> : vector<256x256xf32>
    %2 = tpu.matmul %0, %1, %cst {dimension_numbers = #tpu.dot_dimension_numbers<[1], [0], [0], [1], [0, 0, 1, 1], [], []>} : vector<256x32xf32>, vector<32x256xf32>, vector<256x256xf32> -> vector<256x256xf32>
    %c0_3 = arith.constant 0 : index
    %c0_4 = arith.constant 0 : index
    %3 = vector.load %arg6[%c0_3, %c0_4] : memref<1x256xf32, #tpu.memory_space<vmem>>, vector<1x256xf32>
    %4 = vector.broadcast %3 : vector<1x256xf32> to vector<256x256xf32>
    %5 = arith.addf %2, %4 : vector<256x256xf32>
    %c0_5 = arith.constant 0 : index
    %c0_6 = arith.constant 0 : index
    %6 = vector.load %arg2[%c0_5, %c0_6] : memref<256x256xf32, #tpu.memory_space<vmem>>, vector<256x256xf32>
    %7 = arith.addf %5, %6 : vector<256x256xf32>
    %cst_7 = arith.constant 0.000000e+00 : f32
    %8 = vector.broadcast %cst_7 : f32 to vector<256x256xf32>
    %9 = arith.cmpf ogt, %7, %8 : vector<256x256xf32>
    %cst_8 = arith.constant 2.000000e-01 : f32
    %10 = vector.broadcast %cst_8 : f32 to vector<256x256xf32>
    %11 = arith.mulf %10, %7 : vector<256x256xf32>
    %12 = arith.select %9, %7, %11 : vector<256x256xi1>, vector<256x256xf32>
    %c0_9 = arith.constant 0 : index
    %c0_10 = arith.constant 0 : index
    %13 = vector.load %arg7[%c0_9, %c0_10] : memref<256x256xf32, #tpu.memory_space<vmem>>, vector<256x256xf32>
    %cst_11 = arith.constant dense<0.000000e+00> : vector<256x256xf32>
    %14 = tpu.matmul %12, %13, %cst_11 {dimension_numbers = #tpu.dot_dimension_numbers<[1], [0], [0], [1], [0, 0, 1, 1], [], []>} : vector<256x256xf32>, vector<256x256xf32>, vector<256x256xf32> -> vector<256x256xf32>
    %c0_12 = arith.constant 0 : index
    %c0_13 = arith.constant 0 : index
    %15 = vector.load %arg8[%c0_12, %c0_13] : memref<1x256xf32, #tpu.memory_space<vmem>>, vector<1x256xf32>
    %16 = vector.broadcast %15 : vector<1x256xf32> to vector<256x256xf32>
    %17 = arith.addf %14, %16 : vector<256x256xf32>
    %c0_14 = arith.constant 0 : index
    %c0_15 = arith.constant 0 : index
    %18 = vector.load %arg3[%c0_14, %c0_15] : memref<256x256xf32, #tpu.memory_space<vmem>>, vector<256x256xf32>
    %19 = arith.addf %17, %18 : vector<256x256xf32>
    %cst_16 = arith.constant 0.000000e+00 : f32
    %20 = vector.broadcast %cst_16 : f32 to vector<256x256xf32>
    %21 = arith.cmpf ogt, %19, %20 : vector<256x256xf32>
    %cst_17 = arith.constant 2.000000e-01 : f32
    %22 = vector.broadcast %cst_17 : f32 to vector<256x256xf32>
    %23 = arith.mulf %22, %19 : vector<256x256xf32>
    %24 = arith.select %21, %19, %23 : vector<256x256xi1>, vector<256x256xf32>
    %c0_18 = arith.constant 0 : index
    %c0_19 = arith.constant 0 : index
    %25 = vector.load %arg9[%c0_18, %c0_19] : memref<256x256xf32, #tpu.memory_space<vmem>>, vector<256x256xf32>
    %cst_20 = arith.constant dense<0.000000e+00> : vector<256x256xf32>
    %26 = tpu.matmul %24, %25, %cst_20 {dimension_numbers = #tpu.dot_dimension_numbers<[1], [0], [0], [1], [0, 0, 1, 1], [], []>} : vector<256x256xf32>, vector<256x256xf32>, vector<256x256xf32> -> vector<256x256xf32>
    %c0_21 = arith.constant 0 : index
    %c0_22 = arith.constant 0 : index
    %27 = vector.load %arg10[%c0_21, %c0_22] : memref<1x256xf32, #tpu.memory_space<vmem>>, vector<1x256xf32>
    %28 = vector.broadcast %27 : vector<1x256xf32> to vector<256x256xf32>
    %29 = arith.addf %26, %28 : vector<256x256xf32>
    %c0_23 = arith.constant 0 : index
    %c0_24 = arith.constant 0 : index
    %30 = vector.load %arg4[%c0_23, %c0_24] : memref<256x256xf32, #tpu.memory_space<vmem>>, vector<256x256xf32>
    %31 = arith.addf %29, %30 : vector<256x256xf32>
    %cst_25 = arith.constant 0.000000e+00 : f32
    %32 = vector.broadcast %cst_25 : f32 to vector<256x256xf32>
    %33 = arith.cmpf ogt, %31, %32 : vector<256x256xf32>
    %cst_26 = arith.constant 2.000000e-01 : f32
    %34 = vector.broadcast %cst_26 : f32 to vector<256x256xf32>
    %35 = arith.mulf %34, %31 : vector<256x256xf32>
    %36 = arith.select %33, %31, %35 : vector<256x256xi1>, vector<256x256xf32>
    %c0_27 = arith.constant 0 : index
    %c0_28 = arith.constant 0 : index
    %37 = vector.load %arg11[%c0_27, %c0_28] : memref<256x3xf32, #tpu.memory_space<vmem>>, vector<256x3xf32>
    %cst_29 = arith.constant dense<0.000000e+00> : vector<256x3xf32>
    %38 = tpu.matmul %36, %37, %cst_29 {dimension_numbers = #tpu.dot_dimension_numbers<[1], [0], [0], [1], [0, 0, 1, 1], [], []>} : vector<256x256xf32>, vector<256x3xf32>, vector<256x3xf32> -> vector<256x3xf32>
    %c0_30 = arith.constant 0 : index
    %c0_31 = arith.constant 0 : index
    %39 = vector.load %arg12[%c0_30, %c0_31] : memref<1x3xf32, #tpu.memory_space<vmem>>, vector<1x3xf32>
    %40 = vector.broadcast %39 : vector<1x3xf32> to vector<256x3xf32>
    %41 = arith.addf %38, %40 : vector<256x3xf32>
    %c0_32 = arith.constant 0 : index
    %c0_33 = arith.constant 0 : index
    %42 = vector.load %arg13[%c0_32, %c0_33] : memref<256x3xf32, #tpu.memory_space<vmem>>, vector<256x3xf32>
    tpu.vector_store %arg13[%c0_32, %c0_33], %41 {strides = array<i32>} : memref<256x3xf32, #tpu.memory_space<vmem>>, vector<256x3xf32>,
    return
  }
  func.func @transform_0(%arg0: i32) -> (i32, i32) {
    %c0_i32 = arith.constant 0 : i32
    %c0_i32_0 = arith.constant 0 : i32
    return %arg0, %c0_i32 : i32, i32
  }
  func.func @transform_1(%arg0: i32) -> (i32, i32) {
    %c0_i32 = arith.constant 0 : i32
    %c0_i32_0 = arith.constant 0 : i32
    return %arg0, %c0_i32 : i32, i32
  }
  func.func @transform_2(%arg0: i32) -> (i32, i32) {
    %c0_i32 = arith.constant 0 : i32
    %c0_i32_0 = arith.constant 0 : i32
    return %arg0, %c0_i32 : i32, i32
  }
  func.func @transform_3(%arg0: i32) -> (i32, i32) {
    %c0_i32 = arith.constant 0 : i32
    %c0_i32_0 = arith.constant 0 : i32
    return %arg0, %c0_i32 : i32, i32
  }
  func.func @transform_4(%arg0: i32) -> (i32, i32) {
    %c0_i32 = arith.constant 0 : i32
    %c0_i32_0 = arith.constant 0 : i32
    %c0_i32_1 = arith.constant 0 : i32
    return %c0_i32, %c0_i32_0 : i32, i32
  }
  func.func @transform_5(%arg0: i32) -> (i32, i32) {
    %c0_i32 = arith.constant 0 : i32
    %c0_i32_0 = arith.constant 0 : i32
    %c0_i32_1 = arith.constant 0 : i32
    return %c0_i32, %c0_i32_0 : i32, i32
  }
  func.func @transform_6(%arg0: i32) -> (i32, i32) {
    %c0_i32 = arith.constant 0 : i32
    %c0_i32_0 = arith.constant 0 : i32
    %c0_i32_1 = arith.constant 0 : i32
    return %c0_i32, %c0_i32_0 : i32, i32
  }
  func.func @transform_7(%arg0: i32) -> (i32, i32) {
    %c0_i32 = arith.constant 0 : i32
    %c0_i32_0 = arith.constant 0 : i32
    %c0_i32_1 = arith.constant 0 : i32
    return %c0_i32, %c0_i32_0 : i32, i32
  }
  func.func @transform_8(%arg0: i32) -> (i32, i32) {
    %c0_i32 = arith.constant 0 : i32
    %c0_i32_0 = arith.constant 0 : i32
    %c0_i32_1 = arith.constant 0 : i32
    return %c0_i32, %c0_i32_0 : i32, i32
  }
  func.func @transform_9(%arg0: i32) -> (i32, i32) {
    %c0_i32 = arith.constant 0 : i32
    %c0_i32_0 = arith.constant 0 : i32
    %c0_i32_1 = arith.constant 0 : i32
    return %c0_i32, %c0_i32_0 : i32, i32
  }
  func.func @transform_10(%arg0: i32) -> (i32, i32) {
    %c0_i32 = arith.constant 0 : i32
    %c0_i32_0 = arith.constant 0 : i32
    %c0_i32_1 = arith.constant 0 : i32
    return %c0_i32, %c0_i32_0 : i32, i32
  }
  func.func @transform_11(%arg0: i32) -> (i32, i32) {
    %c0_i32 = arith.constant 0 : i32
    %c0_i32_0 = arith.constant 0 : i32
    %c0_i32_1 = arith.constant 0 : i32
    return %c0_i32, %c0_i32_0 : i32, i32
  }
  func.func @transform_12(%arg0: i32) -> (i32, i32) {
    %c0_i32 = arith.constant 0 : i32
    %c0_i32_0 = arith.constant 0 : i32
    return %arg0, %c0_i32 : i32, i32
  }
}

</mosaic_0001>

<llo_original>
// kernel: tpu_custom_call.1
$region0: #{tpu_custom_call.1}
  #allocation0 [shape = 'u32[]', space=smem, size = 0x4, offset = 0x4, fixed_abs, tag = 'smem constant byte address 0x4 - core index']
  #allocation1 [shape = 'u32[144,128]{1,0:T(1,128)}', space=vmem, size = 0x12000, scoped, tag = 'internal scratch']
  %s0 = inlined_call_operand.vmem [shape: f32[256,32], index: 0, kind: input, shape index: {}]
  %s1 = inlined_call_operand.vmem [shape: f32[256,256], index: 1, kind: input, shape index: {}]
  %s2 = inlined_call_operand.hbm [shape: f32[256,256], index: 2, kind: input, shape index: {}]
  %s3 = inlined_call_operand.hbm [shape: f32[256,256], index: 3, kind: input, shape index: {}]
  %s4 = inlined_call_operand.vmem [shape: f32[32,256], index: 4, kind: input, shape index: {}]
  %s5 = inlined_call_operand.vmem [shape: f32[1,256], index: 5, kind: input, shape index: {}]
  %s6 = inlined_call_operand.hbm [shape: f32[256,256], index: 6, kind: input, shape index: {}]
  %s7 = inlined_call_operand.vmem [shape: f32[1,256], index: 7, kind: input, shape index: {}]
  %s8 = inlined_call_operand.hbm [shape: f32[256,256], index: 8, kind: input, shape index: {}]
  %s9 = inlined_call_operand.vmem [shape: f32[1,256], index: 9, kind: input, shape index: {}]
  %s10 = inlined_call_operand.vmem [shape: f32[256,3], index: 10, kind: input, shape index: {}]
  %s11 = inlined_call_operand.vmem [shape: f32[1,3], index: 11, kind: input, shape index: {}]
  %s12 = inlined_call_operand.vmem [shape: f32[256,3], index: 12, kind: output, shape index: {}]
  %s13 = sld [smem:[#allocation0]]
  $region74: #{tpu_custom_call.1} parent=0
    _
  %s15 = ssub.s32 1, %s13
  %s16 = scalar_select 0, %s15, %s13
  $region1: #{tpu_custom_call.1} parent=0
    #allocation2 [shape = 'u8[262144]{0}', space=vmem, size = 0x40000, scoped, tag = 'input window, operand 2, single buffered']
    #allocation3 [shape = 's32[1]{0}', space=sflag, size = 0x4, scoped, tag = 'scoped memory for tpu_custom_call.1']
    #allocation4 [shape = 'u8[262144]{0}', space=vmem, size = 0x40000, scoped, tag = 'input window, operand 3, single buffered']
    #allocation5 [shape = 's32[1]{0}', space=sflag, size = 0x4, scoped, tag = 'scoped memory for tpu_custom_call.1']
    #allocation6 [shape = 'u8[262144]{0}', space=vmem, size = 0x40000, scoped, tag = 'input window, operand 6, single buffered']
    #allocation7 [shape = 'u8[262144]{0}', space=vmem, size = 0x40000, scoped, tag = 'input window, operand 8, single buffered']
    #allocation8 [shape = 's32[1]{0}', space=sflag, size = 0x4, scoped, tag = 'scoped memory for tpu_custom_call.1']
    %17 = vsyncpa [#allocation3], 0
    %18 = vsyncpa [#allocation5], 0
    %19 = vsyncpa [#allocation8], 0
    // Predicated region
    $region2: #{tpu_custom_call.1} parent=1 // pred_check
      _
    $region3: #{tpu_custom_call.1} parent=1 // pred_check_branch
      %21 = sbr.rel (0) target = $region5
    $region4: #{tpu_custom_call.1} parent=1 // pred_region
      _
    $region5: #{tpu_custom_call.1} parent=1 // pred_fallthru
      _
    // Predicated region
    $region6: #{tpu_custom_call.1} parent=1 // pred_check
      _
    $region7: #{tpu_custom_call.1} parent=1 // pred_check_branch
      %23 = sbr.rel (0) target = $region9
    $region8: #{tpu_custom_call.1} parent=1 // pred_region
      _
    $region9: #{tpu_custom_call.1} parent=1 // pred_fallthru
      _
    // Predicated region
    $region10: #{tpu_custom_call.1} parent=1 // pred_check
      _
    $region11: #{tpu_custom_call.1} parent=1 // pred_check_branch
      %25 = sbr.rel (0) target = $region13
    $region12: #{tpu_custom_call.1} parent=1 // pred_region
      %s27 = ssub.s32 8192, 8192
      %28 = vsyncadd [#allocation3], %s27
      %s29 = sshll.u32 [#allocation2], 4
      %s30 = int_to_ptr.vmem [resolvable:$true] %s29
      %35 = dma.hbm_to_vmem [thread:$0]  %s2, 8192, %s30, [#allocation3], 256, 256, 16
    $region13: #{tpu_custom_call.1} parent=1 // pred_fallthru
      _
    // Predicated region
    $region14: #{tpu_custom_call.1} parent=1 // pred_check
      _
    $region15: #{tpu_custom_call.1} parent=1 // pred_check_branch
      %37 = sbr.rel (0) target = $region17
    $region16: #{tpu_custom_call.1} parent=1 // pred_region
      %s39 = ssub.s32 8192, 8192
      %40 = vsyncadd [#allocation5], %s39
      %s41 = sshll.u32 [#allocation4], 4
      %s42 = int_to_ptr.vmem [resolvable:$true] %s41
      %47 = dma.hbm_to_vmem [thread:$0]  %s3, 8192, %s42, [#allocation5], 256, 256, 16
    $region17: #{tpu_custom_call.1} parent=1 // pred_fallthru
      _
    // Predicated region
    $region18: #{tpu_custom_call.1} parent=1 // pred_check
      _
    $region19: #{tpu_custom_call.1} parent=1 // pred_check_branch
      %49 = sbr.rel (0) target = $region21
    $region20: #{tpu_custom_call.1} parent=1 // pred_region
      _
    $region21: #{tpu_custom_call.1} parent=1 // pred_fallthru
      _
    // Predicated region
    $region22: #{tpu_custom_call.1} parent=1 // pred_check
      _
    $region23: #{tpu_custom_call.1} parent=1 // pred_check_branch
      %51 = sbr.rel (0) target = $region25
    $region24: #{tpu_custom_call.1} parent=1 // pred_region
      _
    $region25: #{tpu_custom_call.1} parent=1 // pred_fallthru
      _
    // Predicated region
    $region26: #{tpu_custom_call.1} parent=1 // pred_check
      _
    $region27: #{tpu_custom_call.1} parent=1 // pred_check_branch
      %53 = sbr.rel (0) target = $region29
    $region28: #{tpu_custom_call.1} parent=1 // pred_region
      %s55 = ssub.s32 8192, 8192
      %56 = vsyncadd [#allocation5], %s55
      %s57 = sshll.u32 [#allocation6], 4
      %s58 = int_to_ptr.vmem [resolvable:$true] %s57
      %63 = dma.hbm_to_vmem [thread:$0]  %s6, 8192, %s58, [#allocation5], 256, 256, 16
    $region29: #{tpu_custom_call.1} parent=1 // pred_fallthru
      _
    // Predicated region
    $region30: #{tpu_custom_call.1} parent=1 // pred_check
      _
    $region31: #{tpu_custom_call.1} parent=1 // pred_check_branch
      %65 = sbr.rel (0) target = $region33
    $region32: #{tpu_custom_call.1} parent=1 // pred_region
      _
    $region33: #{tpu_custom_call.1} parent=1 // pred_fallthru
      _
    // Predicated region
    $region34: #{tpu_custom_call.1} parent=1 // pred_check
      _
    $region35: #{tpu_custom_call.1} parent=1 // pred_check_branch
      %67 = sbr.rel (0) target = $region37
    $region36: #{tpu_custom_call.1} parent=1 // pred_region
      %s69 = ssub.s32 8192, 8192
      %70 = vsyncadd [#allocation8], %s69
      %s71 = sshll.u32 [#allocation7], 4
      %s72 = int_to_ptr.vmem [resolvable:$true] %s71
      %77 = dma.hbm_to_vmem [thread:$0]  %s8, 8192, %s72, [#allocation8], 256, 256, 16
    $region37: #{tpu_custom_call.1} parent=1 // pred_fallthru
      _
    // Predicated region
    $region38: #{tpu_custom_call.1} parent=1 // pred_check
      _
    $region39: #{tpu_custom_call.1} parent=1 // pred_check_branch
      %79 = sbr.rel (0) target = $region41
    $region40: #{tpu_custom_call.1} parent=1 // pred_region
      _
    $region41: #{tpu_custom_call.1} parent=1 // pred_fallthru
      _
    // Predicated region
    $region42: #{tpu_custom_call.1} parent=1 // pred_check
      _
    $region43: #{tpu_custom_call.1} parent=1 // pred_check_branch
      %81 = sbr.rel (0) target = $region45
    $region44: #{tpu_custom_call.1} parent=1 // pred_region
      _
    $region45: #{tpu_custom_call.1} parent=1 // pred_fallthru
      _
    // Predicated region
    $region46: #{tpu_custom_call.1} parent=1 // pred_check
      _
    $region47: #{tpu_custom_call.1} parent=1 // pred_check_branch
      %83 = sbr.rel (0) target = $region49
    $region48: #{tpu_custom_call.1} parent=1 // pred_region
      _
    $region49: #{tpu_custom_call.1} parent=1 // pred_fallthru
      _
    // Predicated region
    $region50: #{tpu_custom_call.1} parent=1 // pred_check
      _
    $region51: #{tpu_custom_call.1} parent=1 // pred_check_branch
      %85 = sbr.rel (0) target = $region53
    $region52: #{tpu_custom_call.1} parent=1 // pred_region
      %86 = dma.done [#allocation3], 8192
    $region53: #{tpu_custom_call.1} parent=1 // pred_fallthru
      _
    // Predicated region
    $region54: #{tpu_custom_call.1} parent=1 // pred_check
      _
    $region55: #{tpu_custom_call.1} parent=1 // pred_check_branch
      %88 = sbr.rel (0) target = $region57
    $region56: #{tpu_custom_call.1} parent=1 // pred_region
      %89 = dma.done [#allocation5], 8192
    $region57: #{tpu_custom_call.1} parent=1 // pred_fallthru
      _
    // Predicated region
    $region58: #{tpu_custom_call.1} parent=1 // pred_check
      _
    $region59: #{tpu_custom_call.1} parent=1 // pred_check_branch
      %91 = sbr.rel (0) target = $region61
    $region60: #{tpu_custom_call.1} parent=1 // pred_region
      %92 = dma.done [#allocation5], 8192
    $region61: #{tpu_custom_call.1} parent=1 // pred_fallthru
      _
    // Predicated region
    $region62: #{tpu_custom_call.1} parent=1 // pred_check
      _
    $region63: #{tpu_custom_call.1} parent=1 // pred_check_branch
      %94 = sbr.rel (0) target = $region65
    $region64: #{tpu_custom_call.1} parent=1 // pred_region
      %95 = dma.done [#allocation8], 8192
    $region65: #{tpu_custom_call.1} parent=1 // pred_fallthru
      _
    %v96 = vld [vmem:[%s0] sm:$0xff]
    %v97 = vld [vmem:[%s0 + $0x8] sm:$0xff]
    %v98 = vld [vmem:[%s0 + $0x10] sm:$0xff]
    %v99 = vld [vmem:[%s0 + $0x18] sm:$0xff]
    %v100 = vld [vmem:[%s0 + $0x20] sm:$0xff]
    %v101 = vld [vmem:[%s0 + $0x28] sm:$0xff]
    %v102 = vld [vmem:[%s0 + $0x30] sm:$0xff]
    %v103 = vld [vmem:[%s0 + $0x38] sm:$0xff]
    %v104 = vld [vmem:[%s0 + $0x40] sm:$0xff]
    %v105 = vld [vmem:[%s0 + $0x48] sm:$0xff]
    %v106 = vld [vmem:[%s0 + $0x50] sm:$0xff]
    %v107 = vld [vmem:[%s0 + $0x58] sm:$0xff]
    %v108 = vld [vmem:[%s0 + $0x60] sm:$0xff]
    %v109 = vld [vmem:[%s0 + $0x68] sm:$0xff]
    %v110 = vld [vmem:[%s0 + $0x70] sm:$0xff]
    %v111 = vld [vmem:[%s0 + $0x78] sm:$0xff]
    %v112 = vld [vmem:[%s0 + $0x80] sm:$0xff]
    %v113 = vld [vmem:[%s0 + $0x88] sm:$0xff]
    %v114 = vld [vmem:[%s0 + $0x90] sm:$0xff]
    %v115 = vld [vmem:[%s0 + $0x98] sm:$0xff]
    %v116 = vld [vmem:[%s0 + $0xa0] sm:$0xff]
    %v117 = vld [vmem:[%s0 + $0xa8] sm:$0xff]
    %v118 = vld [vmem:[%s0 + $0xb0] sm:$0xff]
    %v119 = vld [vmem:[%s0 + $0xb8] sm:$0xff]
    %v120 = vld [vmem:[%s0 + $0xc0] sm:$0xff]
    %v121 = vld [vmem:[%s0 + $0xc8] sm:$0xff]
    %v122 = vld [vmem:[%s0 + $0xd0] sm:$0xff]
    %v123 = vld [vmem:[%s0 + $0xd8] sm:$0xff]
    %v124 = vld [vmem:[%s0 + $0xe0] sm:$0xff]
    %v125 = vld [vmem:[%s0 + $0xe8] sm:$0xff]
    %v126 = vld [vmem:[%s0 + $0xf0] sm:$0xff]
    %v127 = vld [vmem:[%s0 + $0xf8] sm:$0xff]
    %v128 = vld [vmem:[%s4] sm:$0xff]
    %v129 = vld [vmem:[%s4 + $0x8] sm:$0xff]
    %v130 = vld [vmem:[%s4 + $0x10] sm:$0xff]
    %v131 = vld [vmem:[%s4 + $0x18] sm:$0xff]
    %v132 = vld [vmem:[%s4 + $0x20] sm:$0xff]
    %v133 = vld [vmem:[%s4 + $0x28] sm:$0xff]
    %v134 = vld [vmem:[%s4 + $0x30] sm:$0xff]
    %v135 = vld [vmem:[%s4 + $0x38] sm:$0xff]
    %v136 = vld [vmem:[%s5] sm:$0x3]
    %v138 = vlaneseq
    %v139 = vshrl.u32 %v138, 7
    %v140 = vsub.s32 0, %v139
    %v141 = vrot.slane %v136, %v140
    %v142 = vlaneseq
    %v143 = vshrl.u32 %v142, 7
    %v144 = vsub.s32 1, %v143
    %v145 = vrot.slane %v136, %v144
    %vm148 = vcmask 261120
    %v150 = vsel %vm148, %v96, 0
    %v153 = vsel %vm148, %v97, 0
    %v156 = vsel %vm148, %v98, 0
    %v159 = vsel %vm148, %v99, 0
    %v162 = vsel %vm148, %v100, 0
    %v165 = vsel %vm148, %v101, 0
    %v168 = vsel %vm148, %v102, 0
    %v171 = vsel %vm148, %v103, 0
    %v174 = vsel %vm148, %v104, 0
    %v177 = vsel %vm148, %v105, 0
    %v180 = vsel %vm148, %v106, 0
    %v183 = vsel %vm148, %v107, 0
    %v186 = vsel %vm148, %v108, 0
    %v189 = vsel %vm148, %v109, 0
    %v192 = vsel %vm148, %v110, 0
    %v195 = vsel %vm148, %v111, 0
    %v198 = vsel %vm148, %v112, 0
    %v201 = vsel %vm148, %v113, 0
    %v204 = vsel %vm148, %v114, 0
    %v207 = vsel %vm148, %v115, 0
    %v210 = vsel %vm148, %v116, 0
    %v213 = vsel %vm148, %v117, 0
    %v216 = vsel %vm148, %v118, 0
    %v219 = vsel %vm148, %v119, 0
    %v222 = vsel %vm148, %v120, 0
    %v225 = vsel %vm148, %v121, 0
    %v228 = vsel %vm148, %v122, 0
    %v231 = vsel %vm148, %v123, 0
    %v234 = vsel %vm148, %v124, 0
    %v237 = vsel %vm148, %v125, 0
    %v240 = vsel %vm148, %v126, 0
    %v243 = vsel %vm148, %v127, 0
    %245 = vmatprep.subr.mxu0 0.0
    %246 = vmatpush1.msra.mxu0 0.0
    %247 = vmatprep.subr.mxu0 0.0
    %248 = vmatpush1.msra.mxu0 0.0
    %249 = vmatprep.subr.mxu0 0.0
    %250 = vmatpush1.msra.mxu0 0.0
    %251 = vmatprep.subr.mxu0 0.0
    %252 = vmatpush1.msra.mxu0 0.0
    %253 = vmatprep.subr.mxu0 0.0
    %254 = vmatpush1.msra.mxu0 0.0
    %255 = vmatprep.subr.mxu0 0.0
    %256 = vmatpush1.msra.mxu0 0.0
    %257 = vmatprep.subr.mxu0 0.0
    %258 = vmatpush1.msra.mxu0 0.0
    %259 = vmatprep.subr.mxu0 0.0
    %260 = vmatpush1.msra.mxu0 0.0
    %261 = vmatprep.subr.mxu0 0.0
    %262 = vmatpush1.msra.mxu0 0.0
    %263 = vmatprep.subr.mxu0 0.0
    %264 = vmatpush1.msra.mxu0 0.0
    %265 = vmatprep.subr.mxu0 0.0
    %266 = vmatpush1.msra.mxu0 0.0
    %267 = vmatprep.subr.mxu0 0.0
    %268 = vmatpush1.msra.mxu0 0.0
    %269 = vmatprep.subr.mxu0 %v135
    %270 = vmatpush1.msra.mxu0 %v134
    %271 = vmatprep.subr.mxu0 %v133
    %272 = vmatpush1.msra.mxu0 %v132
    %273 = vmatprep.subr.mxu0 %v131
    %274 = vmatpush1.msra.mxu0 %v130
    %275 = vmatprep.subr.mxu0 %v129
    %276 = vmatpush1.msra.mxu0 %v128
    %277 = vmatprep.subr.mxu0 0.0
    %278 = vmatpush2.msra.mxu0 0.0
    %279 = vmatprep.subr.mxu0 0.0
    %280 = vmatpush2.msra.mxu0 0.0
    %281 = vmatprep.subr.mxu0 0.0
    %282 = vmatpush2.msra.mxu0 0.0
    %283 = vmatprep.subr.mxu0 0.0
    %284 = vmatpush2.msra.mxu0 0.0
    %285 = vmatprep.subr.mxu0 0.0
    %286 = vmatpush2.msra.mxu0 0.0
    %287 = vmatprep.subr.mxu0 0.0
    %288 = vmatpush2.msra.mxu0 0.0
    %289 = vmatprep.subr.mxu0 0.0
    %290 = vmatpush2.msra.mxu0 0.0
    %291 = vmatprep.subr.mxu0 0.0
    %292 = vmatpush2.msra.mxu0 0.0
    %293 = vmatprep.subr.mxu0 0.0
    %294 = vmatpush2.msra.mxu0 0.0
    %295 = vmatprep.subr.mxu0 0.0
    %296 = vmatpush2.msra.mxu0 0.0
    %297 = vmatprep.subr.mxu0 0.0
    %298 = vmatpush2.msra.mxu0 0.0
    %299 = vmatprep.subr.mxu0 0.0
    %300 = vmatpush2.msra.mxu0 0.0
    %301 = vmatprep.subr.mxu0 0.0
    %302 = vmatpush2.msra.mxu0 0.0
    %303 = vmatprep.subr.mxu0 0.0
    %304 = vmatpush2.msra.mxu0 0.0
    %305 = vmatprep.subr.mxu0 0.0
    %306 = vmatpush2.msra.mxu0 0.0
    %307 = vmatprep.subr.mxu0 0.0
    %308 = vmatpush2.msra.mxu0 0.0
    %309 = vmatprep.mubr.f32.mxu0 0.0
    %310 = vmatmul.mubr.f32.gmra.mxu0 %v150
    %v311 = vpop.f32.mrf.mxu0
    %v312 = vadd.f32 %v141, %v311
    %v313 = vpop.f32.mrf.mxu0
    %v314 = vadd.f32 %v145, %v313
    %315 = vmatprep.mubr.f32.mxu0 0.0
    %316 = vmatmul.mubr.f32.gmra.mxu0 %v153
    %v317 = vpop.f32.mrf.mxu0
    %v318 = vadd.f32 %v141, %v317
    %v319 = vpop.f32.mrf.mxu0
    %v320 = vadd.f32 %v145, %v319
    %321 = vmatprep.mubr.f32.mxu0 0.0
    %322 = vmatmul.mubr.f32.gmra.mxu0 %v156
    %v323 = vpop.f32.mrf.mxu0
    %v324 = vadd.f32 %v141, %v323
    %v325 = vpop.f32.mrf.mxu0
    %v326 = vadd.f32 %v145, %v325
    %327 = vmatprep.mubr.f32.mxu0 0.0
    %328 = vmatmul.mubr.f32.gmra.mxu0 %v159
    %v329 = vpop.f32.mrf.mxu0
    %v330 = vadd.f32 %v141, %v329
    %v331 = vpop.f32.mrf.mxu0
    %v332 = vadd.f32 %v145, %v331
    %333 = vmatprep.mubr.f32.mxu0 0.0
    %334 = vmatmul.mubr.f32.gmra.mxu0 %v162
    %v335 = vpop.f32.mrf.mxu0
    %v336 = vadd.f32 %v141, %v335
    %v337 = vpop.f32.mrf.mxu0
    %v338 = vadd.f32 %v145, %v337
    %339 = vmatprep.mubr.f32.mxu0 0.0
    %340 = vmatmul.mubr.f32.gmra.mxu0 %v165
    %v341 = vpop.f32.mrf.mxu0
    %v342 = vadd.f32 %v141, %v341
    %v343 = vpop.f32.mrf.mxu0
    %v344 = vadd.f32 %v145, %v343
    %345 = vmatprep.mubr.f32.mxu0 0.0
    %346 = vmatmul.mubr.f32.gmra.mxu0 %v168
    %v347 = vpop.f32.mrf.mxu0
    %v348 = vadd.f32 %v141, %v347
    %v349 = vpop.f32.mrf.mxu0
    %v350 = vadd.f32 %v145, %v349
    %351 = vmatprep.mubr.f32.mxu0 0.0
    %352 = vmatmul.mubr.f32.gmra.mxu0 %v171
    %v353 = vpop.f32.mrf.mxu0
    %v354 = vadd.f32 %v141, %v353
    %v355 = vpop.f32.mrf.mxu0
    %v356 = vadd.f32 %v145, %v355
    %357 = vmatprep.mubr.f32.mxu0 0.0
    %358 = vmatmul.mubr.f32.gmra.mxu0 %v174
    %v359 = vpop.f32.mrf.mxu0
    %v360 = vadd.f32 %v141, %v359
    %v361 = vpop.f32.mrf.mxu0
    %v362 = vadd.f32 %v145, %v361
    %363 = vmatprep.mubr.f32.mxu0 0.0
    %364 = vmatmul.mubr.f32.gmra.mxu0 %v177
    %v365 = vpop.f32.mrf.mxu0
    %v366 = vadd.f32 %v141, %v365
    %v367 = vpop.f32.mrf.mxu0
    %v368 = vadd.f32 %v145, %v367
    %369 = vmatprep.mubr.f32.mxu0 0.0
    %370 = vmatmul.mubr.f32.gmra.mxu0 %v180
    %v371 = vpop.f32.mrf.mxu0
    %v372 = vadd.f32 %v141, %v371
    %v373 = vpop.f32.mrf.mxu0
    %v374 = vadd.f32 %v145, %v373
    %375 = vmatprep.mubr.f32.mxu0 0.0
    %376 = vmatmul.mubr.f32.gmra.mxu0 %v183
    %v377 = vpop.f32.mrf.mxu0
    %v378 = vadd.f32 %v141, %v377
    %v379 = vpop.f32.mrf.mxu0
    %v380 = vadd.f32 %v145, %v379
    %381 = vmatprep.mubr.f32.mxu0 0.0
    %382 = vmatmul.mubr.f32.gmra.mxu0 %v186
    %v383 = vpop.f32.mrf.mxu0
    %v384 = vadd.f32 %v141, %v383
    %v385 = vpop.f32.mrf.mxu0
    %v386 = vadd.f32 %v145, %v385
    %387 = vmatprep.mubr.f32.mxu0 0.0
    %388 = vmatmul.mubr.f32.gmra.mxu0 %v189
    %v389 = vpop.f32.mrf.mxu0
    %v390 = vadd.f32 %v141, %v389
    %v391 = vpop.f32.mrf.mxu0
    %v392 = vadd.f32 %v145, %v391
    %393 = vmatprep.mubr.f32.mxu0 0.0
    %394 = vmatmul.mubr.f32.gmra.mxu0 %v192
    %v395 = vpop.f32.mrf.mxu0
    %v396 = vadd.f32 %v141, %v395
    %v397 = vpop.f32.mrf.mxu0
    %v398 = vadd.f32 %v145, %v397
    %399 = vmatprep.mubr.f32.mxu0 0.0
    %400 = vmatmul.mubr.f32.gmra.mxu0 %v195
    %v401 = vpop.f32.mrf.mxu0
    %v402 = vadd.f32 %v141, %v401
    %v403 = vpop.f32.mrf.mxu0
    %v404 = vadd.f32 %v145, %v403
    %405 = vmatprep.mubr.f32.mxu0 0.0
    %406 = vmatmul.mubr.f32.gmra.mxu0 %v198
    %v407 = vpop.f32.mrf.mxu0
    %v408 = vadd.f32 %v141, %v407
    %v409 = vpop.f32.mrf.mxu0
    %v410 = vadd.f32 %v145, %v409
    %411 = vmatprep.mubr.f32.mxu0 0.0
    %412 = vmatmul.mubr.f32.gmra.mxu0 %v201
    %v413 = vpop.f32.mrf.mxu0
    %v414 = vadd.f32 %v141, %v413
    %v415 = vpop.f32.mrf.mxu0
    %v416 = vadd.f32 %v145, %v415
    %417 = vmatprep.mubr.f32.mxu0 0.0
    %418 = vmatmul.mubr.f32.gmra.mxu0 %v204
    %v419 = vpop.f32.mrf.mxu0
    %v420 = vadd.f32 %v141, %v419
    %v421 = vpop.f32.mrf.mxu0
    %v422 = vadd.f32 %v145, %v421
    %423 = vmatprep.mubr.f32.mxu0 0.0
    %424 = vmatmul.mubr.f32.gmra.mxu0 %v207
    %v425 = vpop.f32.mrf.mxu0
    %v426 = vadd.f32 %v141, %v425
    %v427 = vpop.f32.mrf.mxu0
    %v428 = vadd.f32 %v145, %v427
    %429 = vmatprep.mubr.f32.mxu0 0.0
    %430 = vmatmul.mubr.f32.gmra.mxu0 %v210
    %v431 = vpop.f32.mrf.mxu0
    %v432 = vadd.f32 %v141, %v431
    %v433 = vpop.f32.mrf.mxu0
    %v434 = vadd.f32 %v145, %v433
    %435 = vmatprep.mubr.f32.mxu0 0.0
    %436 = vmatmul.mubr.f32.gmra.mxu0 %v213
    %v437 = vpop.f32.mrf.mxu0
    %v438 = vadd.f32 %v141, %v437
    %v439 = vpop.f32.mrf.mxu0
    %v440 = vadd.f32 %v145, %v439
    %441 = vmatprep.mubr.f32.mxu0 0.0
    %442 = vmatmul.mubr.f32.gmra.mxu0 %v216
    %v443 = vpop.f32.mrf.mxu0
    %v444 = vadd.f32 %v141, %v443
    %v445 = vpop.f32.mrf.mxu0
    %v446 = vadd.f32 %v145, %v445
    %447 = vmatprep.mubr.f32.mxu0 0.0
    %448 = vmatmul.mubr.f32.gmra.mxu0 %v219
    %v449 = vpop.f32.mrf.mxu0
    %v450 = vadd.f32 %v141, %v449
    %v451 = vpop.f32.mrf.mxu0
    %v452 = vadd.f32 %v145, %v451
    %453 = vmatprep.mubr.f32.mxu0 0.0
    %454 = vmatmul.mubr.f32.gmra.mxu0 %v222
    %v455 = vpop.f32.mrf.mxu0
    %v456 = vadd.f32 %v141, %v455
    %v457 = vpop.f32.mrf.mxu0
    %v458 = vadd.f32 %v145, %v457
    %459 = vmatprep.mubr.f32.mxu0 0.0
    %460 = vmatmul.mubr.f32.gmra.mxu0 %v225
    %v461 = vpop.f32.mrf.mxu0
    %v462 = vadd.f32 %v141, %v461
    %v463 = vpop.f32.mrf.mxu0
    %v464 = vadd.f32 %v145, %v463
    %465 = vmatprep.mubr.f32.mxu0 0.0
    %466 = vmatmul.mubr.f32.gmra.mxu0 %v228
    %v467 = vpop.f32.mrf.mxu0
    %v468 = vadd.f32 %v141, %v467
    %v469 = vpop.f32.mrf.mxu0
    %v470 = vadd.f32 %v145, %v469
    %471 = vmatprep.mubr.f32.mxu0 0.0
    %472 = vmatmul.mubr.f32.gmra.mxu0 %v231
    %v473 = vpop.f32.mrf.mxu0
    %v474 = vadd.f32 %v141, %v473
    %v475 = vpop.f32.mrf.mxu0
    %v476 = vadd.f32 %v145, %v475
    %477 = vmatprep.mubr.f32.mxu0 0.0
    %478 = vmatmul.mubr.f32.gmra.mxu0 %v234
    %v479 = vpop.f32.mrf.mxu0
    %v480 = vadd.f32 %v141, %v479
    %v481 = vpop.f32.mrf.mxu0
    %v482 = vadd.f32 %v145, %v481
    %483 = vmatprep.mubr.f32.mxu0 0.0
    %484 = vmatmul.mubr.f32.gmra.mxu0 %v237
    %v485 = vpop.f32.mrf.mxu0
    %v486 = vadd.f32 %v141, %v485
    %v487 = vpop.f32.mrf.mxu0
    %v488 = vadd.f32 %v145, %v487
    %489 = vmatprep.mubr.f32.mxu0 0.0
    %490 = vmatmul.mubr.f32.gmra.mxu0 %v240
    %v491 = vpop.f32.mrf.mxu0
    %v492 = vadd.f32 %v141, %v491
    %v493 = vpop.f32.mrf.mxu0
    %v494 = vadd.f32 %v145, %v493
    %495 = vmatprep.mubr.f32.mxu0 0.0
    %496 = vmatmul.mubr.f32.gmra.mxu0 %v243
    %v497 = vpop.f32.mrf.mxu0
    %v498 = vadd.f32 %v141, %v497
    %v499 = vpop.f32.mrf.mxu0
    %v500 = vadd.f32 %v145, %v499
    %501 = vdwg.mxu0
    %v502 = vld [vmem:[%s1] sm:$0xff]
    %v503 = vld [vmem:[%s1 + $0x8] sm:$0xff]
    %v504 = vld [vmem:[%s1 + $0x10] sm:$0xff]
    %v505 = vld [vmem:[%s1 + $0x18] sm:$0xff]
    %v506 = vld [vmem:[%s1 + $0x20] sm:$0xff]
    %v507 = vld [vmem:[%s1 + $0x28] sm:$0xff]
    %v508 = vld [vmem:[%s1 + $0x30] sm:$0xff]
    %v509 = vld [vmem:[%s1 + $0x38] sm:$0xff]
    %v510 = vld [vmem:[%s1 + $0x40] sm:$0xff]
    %v511 = vld [vmem:[%s1 + $0x48] sm:$0xff]
    %v512 = vld [vmem:[%s1 + $0x50] sm:$0xff]
    %v513 = vld [vmem:[%s1 + $0x58] sm:$0xff]
    %v514 = vld [vmem:[%s1 + $0x60] sm:$0xff]
    %v515 = vld [vmem:[%s1 + $0x68] sm:$0xff]
    %v516 = vld [vmem:[%s1 + $0x70] sm:$0xff]
    %v517 = vld [vmem:[%s1 + $0x78] sm:$0xff]
    %v518 = vld [vmem:[%s1 + $0x80] sm:$0xff]
    %v519 = vld [vmem:[%s1 + $0x88] sm:$0xff]
    %v520 = vld [vmem:[%s1 + $0x90] sm:$0xff]
    %v521 = vld [vmem:[%s1 + $0x98] sm:$0xff]
    %v522 = vld [vmem:[%s1 + $0xa0] sm:$0xff]
    %v523 = vld [vmem:[%s1 + $0xa8] sm:$0xff]
    %v524 = vld [vmem:[%s1 + $0xb0] sm:$0xff]
    %v525 = vld [vmem:[%s1 + $0xb8] sm:$0xff]
    %v526 = vld [vmem:[%s1 + $0xc0] sm:$0xff]
    %v527 = vld [vmem:[%s1 + $0xc8] sm:$0xff]
    %v528 = vld [vmem:[%s1 + $0xd0] sm:$0xff]
    %v529 = vld [vmem:[%s1 + $0xd8] sm:$0xff]
    %v530 = vld [vmem:[%s1 + $0xe0] sm:$0xff]
    %v531 = vld [vmem:[%s1 + $0xe8] sm:$0xff]
    %v532 = vld [vmem:[%s1 + $0xf0] sm:$0xff]
    %v533 = vld [vmem:[%s1 + $0xf8] sm:$0xff]
    %v534 = vld [vmem:[%s1 + $0x100] sm:$0xff]
    %v535 = vld [vmem:[%s1 + $0x108] sm:$0xff]
    %v536 = vld [vmem:[%s1 + $0x110] sm:$0xff]
    %v537 = vld [vmem:[%s1 + $0x118] sm:$0xff]
    %v538 = vld [vmem:[%s1 + $0x120] sm:$0xff]
    %v539 = vld [vmem:[%s1 + $0x128] sm:$0xff]
    %v540 = vld [vmem:[%s1 + $0x130] sm:$0xff]
    %v541 = vld [vmem:[%s1 + $0x138] sm:$0xff]
    %v542 = vld [vmem:[%s1 + $0x140] sm:$0xff]
    %v543 = vld [vmem:[%s1 + $0x148] sm:$0xff]
    %v544 = vld [vmem:[%s1 + $0x150] sm:$0xff]
    %v545 = vld [vmem:[%s1 + $0x158] sm:$0xff]
    %v546 = vld [vmem:[%s1 + $0x160] sm:$0xff]
    %v547 = vld [vmem:[%s1 + $0x168] sm:$0xff]
    %v548 = vld [vmem:[%s1 + $0x170] sm:$0xff]
    %v549 = vld [vmem:[%s1 + $0x178] sm:$0xff]
    %v550 = vld [vmem:[%s1 + $0x180] sm:$0xff]
    %v551 = vld [vmem:[%s1 + $0x188] sm:$0xff]
    %v552 = vld [vmem:[%s1 + $0x190] sm:$0xff]
    %v553 = vld [vmem:[%s1 + $0x198] sm:$0xff]
    %v554 = vld [vmem:[%s1 + $0x1a0] sm:$0xff]
    %v555 = vld [vmem:[%s1 + $0x1a8] sm:$0xff]
    %v556 = vld [vmem:[%s1 + $0x1b0] sm:$0xff]
    %v557 = vld [vmem:[%s1 + $0x1b8] sm:$0xff]
    %v558 = vld [vmem:[%s1 + $0x1c0] sm:$0xff]
    %v559 = vld [vmem:[%s1 + $0x1c8] sm:$0xff]
    %v560 = vld [vmem:[%s1 + $0x1d0] sm:$0xff]
    %v561 = vld [vmem:[%s1 + $0x1d8] sm:$0xff]
    %v562 = vld [vmem:[%s1 + $0x1e0] sm:$0xff]
    %v563 = vld [vmem:[%s1 + $0x1e8] sm:$0xff]
    %v564 = vld [vmem:[%s1 + $0x1f0] sm:$0xff]
    %v565 = vld [vmem:[%s1 + $0x1f8] sm:$0xff]
    %v566 = vadd.f32 %v312, %v502
    %v567 = vadd.f32 %v314, %v503
    %v568 = vadd.f32 %v318, %v504
    %v569 = vadd.f32 %v320, %v505
    %v570 = vadd.f32 %v324, %v506
    %v571 = vadd.f32 %v326, %v507
    %v572 = vadd.f32 %v330, %v508
    %v573 = vadd.f32 %v332, %v509
    %v574 = vadd.f32 %v336, %v510
    %v575 = vadd.f32 %v338, %v511
    %v576 = vadd.f32 %v342, %v512
    %v577 = vadd.f32 %v344, %v513
    %v578 = vadd.f32 %v348, %v514
    %v579 = vadd.f32 %v350, %v515
    %v580 = vadd.f32 %v354, %v516
    %v581 = vadd.f32 %v356, %v517
    %v582 = vadd.f32 %v360, %v518
    %v583 = vadd.f32 %v362, %v519
    %v584 = vadd.f32 %v366, %v520
    %v585 = vadd.f32 %v368, %v521
    %v586 = vadd.f32 %v372, %v522
    %v587 = vadd.f32 %v374, %v523
    %v588 = vadd.f32 %v378, %v524
    %v589 = vadd.f32 %v380, %v525
    %v590 = vadd.f32 %v384, %v526
    %v591 = vadd.f32 %v386, %v527
    %v592 = vadd.f32 %v390, %v528
    %v593 = vadd.f32 %v392, %v529
    %v594 = vadd.f32 %v396, %v530
    %v595 = vadd.f32 %v398, %v531
    %v596 = vadd.f32 %v402, %v532
    %v597 = vadd.f32 %v404, %v533
    %v598 = vadd.f32 %v408, %v534
    %v599 = vadd.f32 %v410, %v535
    %v600 = vadd.f32 %v414, %v536
    %v601 = vadd.f32 %v416, %v537
    %v602 = vadd.f32 %v420, %v538
    %v603 = vadd.f32 %v422, %v539
    %v604 = vadd.f32 %v426, %v540
    %v605 = vadd.f32 %v428, %v541
    %v606 = vadd.f32 %v432, %v542
    %v607 = vadd.f32 %v434, %v543
    %v608 = vadd.f32 %v438, %v544
    %v609 = vadd.f32 %v440, %v545
    %v610 = vadd.f32 %v444, %v546
    %v611 = vadd.f32 %v446, %v547
    %v612 = vadd.f32 %v450, %v548
    %v613 = vadd.f32 %v452, %v549
    %v614 = vadd.f32 %v456, %v550
    %v615 = vadd.f32 %v458, %v551
    %v616 = vadd.f32 %v462, %v552
    %v617 = vadd.f32 %v464, %v553
    %v618 = vadd.f32 %v468, %v554
    %v619 = vadd.f32 %v470, %v555
    %v620 = vadd.f32 %v474, %v556
    %v621 = vadd.f32 %v476, %v557
    %v622 = vadd.f32 %v480, %v558
    %v623 = vadd.f32 %v482, %v559
    %v624 = vadd.f32 %v486, %v560
    %v625 = vadd.f32 %v488, %v561
    %v626 = vadd.f32 %v492, %v562
    %v627 = vadd.f32 %v494, %v563
    %v628 = vadd.f32 %v498, %v564
    %v629 = vadd.f32 %v500, %v565
    %vm630 = vcmp.gt.f32.partialorder %v566, 0.0
    %vm631 = vcmp.gt.f32.partialorder %v567, 0.0
    %vm632 = vcmp.gt.f32.partialorder %v568, 0.0
    %vm633 = vcmp.gt.f32.partialorder %v569, 0.0
    %vm634 = vcmp.gt.f32.partialorder %v570, 0.0
    %vm635 = vcmp.gt.f32.partialorder %v571, 0.0
    %vm636 = vcmp.gt.f32.partialorder %v572, 0.0
    %vm637 = vcmp.gt.f32.partialorder %v573, 0.0
    %vm638 = vcmp.gt.f32.partialorder %v574, 0.0
    %vm639 = vcmp.gt.f32.partialorder %v575, 0.0
    %vm640 = vcmp.gt.f32.partialorder %v576, 0.0
    %vm641 = vcmp.gt.f32.partialorder %v577, 0.0
    %vm642 = vcmp.gt.f32.partialorder %v578, 0.0
    %vm643 = vcmp.gt.f32.partialorder %v579, 0.0
    %vm644 = vcmp.gt.f32.partialorder %v580, 0.0
    %vm645 = vcmp.gt.f32.partialorder %v581, 0.0
    %vm646 = vcmp.gt.f32.partialorder %v582, 0.0
    %vm647 = vcmp.gt.f32.partialorder %v583, 0.0
    %vm648 = vcmp.gt.f32.partialorder %v584, 0.0
    %vm649 = vcmp.gt.f32.partialorder %v585, 0.0
    %vm650 = vcmp.gt.f32.partialorder %v586, 0.0
    %vm651 = vcmp.gt.f32.partialorder %v587, 0.0
    %vm652 = vcmp.gt.f32.partialorder %v588, 0.0
    %vm653 = vcmp.gt.f32.partialorder %v589, 0.0
    %vm654 = vcmp.gt.f32.partialorder %v590, 0.0
    %vm655 = vcmp.gt.f32.partialorder %v591, 0.0
    %vm656 = vcmp.gt.f32.partialorder %v592, 0.0
    %vm657 = vcmp.gt.f32.partialorder %v593, 0.0
    %vm658 = vcmp.gt.f32.partialorder %v594, 0.0
    %vm659 = vcmp.gt.f32.partialorder %v595, 0.0
    %vm660 = vcmp.gt.f32.partialorder %v596, 0.0
    %vm661 = vcmp.gt.f32.partialorder %v597, 0.0
    %vm662 = vcmp.gt.f32.partialorder %v598, 0.0
    %vm663 = vcmp.gt.f32.partialorder %v599, 0.0
    %vm664 = vcmp.gt.f32.partialorder %v600, 0.0
    %vm665 = vcmp.gt.f32.partialorder %v601, 0.0
    %vm666 = vcmp.gt.f32.partialorder %v602, 0.0
    %vm667 = vcmp.gt.f32.partialorder %v603, 0.0
    %vm668 = vcmp.gt.f32.partialorder %v604, 0.0
    %vm669 = vcmp.gt.f32.partialorder %v605, 0.0
    %vm670 = vcmp.gt.f32.partialorder %v606, 0.0
    %vm671 = vcmp.gt.f32.partialorder %v607, 0.0
    %vm672 = vcmp.gt.f32.partialorder %v608, 0.0
    %vm673 = vcmp.gt.f32.partialorder %v609, 0.0
    %vm674 = vcmp.gt.f32.partialorder %v610, 0.0
    %vm675 = vcmp.gt.f32.partialorder %v611, 0.0
    %vm676 = vcmp.gt.f32.partialorder %v612, 0.0
    %vm677 = vcmp.gt.f32.partialorder %v613, 0.0
    %vm678 = vcmp.gt.f32.partialorder %v614, 0.0
    %vm679 = vcmp.gt.f32.partialorder %v615, 0.0
    %vm680 = vcmp.gt.f32.partialorder %v616, 0.0
    %vm681 = vcmp.gt.f32.partialorder %v617, 0.0
    %vm682 = vcmp.gt.f32.partialorder %v618, 0.0
    %vm683 = vcmp.gt.f32.partialorder %v619, 0.0
    %vm684 = vcmp.gt.f32.partialorder %v620, 0.0
    %vm685 = vcmp.gt.f32.partialorder %v621, 0.0
    %vm686 = vcmp.gt.f32.partialorder %v622, 0.0
    %vm687 = vcmp.gt.f32.partialorder %v623, 0.0
    %vm688 = vcmp.gt.f32.partialorder %v624, 0.0
    %vm689 = vcmp.gt.f32.partialorder %v625, 0.0
    %vm690 = vcmp.gt.f32.partialorder %v626, 0.0
    %vm691 = vcmp.gt.f32.partialorder %v627, 0.0
    %vm692 = vcmp.gt.f32.partialorder %v628, 0.0
    %vm693 = vcmp.gt.f32.partialorder %v629, 0.0
    %v694 = vmul.f32 %v566, 0.2
    %v695 = vmul.f32 %v567, 0.2
    %v696 = vmul.f32 %v568, 0.2
    %v697 = vmul.f32 %v569, 0.2
    %v698 = vmul.f32 %v570, 0.2
    %v699 = vmul.f32 %v571, 0.2
    %v700 = vmul.f32 %v572, 0.2
    %v701 = vmul.f32 %v573, 0.2
    %v702 = vmul.f32 %v574, 0.2
    %v703 = vmul.f32 %v575, 0.2
    %v704 = vmul.f32 %v576, 0.2
    %v705 = vmul.f32 %v577, 0.2
    %v706 = vmul.f32 %v578, 0.2
    %v707 = vmul.f32 %v579, 0.2
    %v708 = vmul.f32 %v580, 0.2
    %v709 = vmul.f32 %v581, 0.2
    %v710 = vmul.f32 %v582, 0.2
    %v711 = vmul.f32 %v583, 0.2
    %v712 = vmul.f32 %v584, 0.2
    %v713 = vmul.f32 %v585, 0.2
    %v714 = vmul.f32 %v586, 0.2
    %v715 = vmul.f32 %v587, 0.2
    %v716 = vmul.f32 %v588, 0.2
    %v717 = vmul.f32 %v589, 0.2
    %v718 = vmul.f32 %v590, 0.2
    %v719 = vmul.f32 %v591, 0.2
    %v720 = vmul.f32 %v592, 0.2
    %v721 = vmul.f32 %v593, 0.2
    %v722 = vmul.f32 %v594, 0.2
    %v723 = vmul.f32 %v595, 0.2
    %v724 = vmul.f32 %v596, 0.2
    %v725 = vmul.f32 %v597, 0.2
    %v726 = vmul.f32 %v598, 0.2
    %v727 = vmul.f32 %v599, 0.2
    %v728 = vmul.f32 %v600, 0.2
    %v729 = vmul.f32 %v601, 0.2
    %v730 = vmul.f32 %v602, 0.2
    %v731 = vmul.f32 %v603, 0.2
    %v732 = vmul.f32 %v604, 0.2
    %v733 = vmul.f32 %v605, 0.2
    %v734 = vmul.f32 %v606, 0.2
    %v735 = vmul.f32 %v607, 0.2
    %v736 = vmul.f32 %v608, 0.2
    %v737 = vmul.f32 %v609, 0.2
    %v738 = vmul.f32 %v610, 0.2
    %v739 = vmul.f32 %v611, 0.2
    %v740 = vmul.f32 %v612, 0.2
    %v741 = vmul.f32 %v613, 0.2
    %v742 = vmul.f32 %v614, 0.2
    %v743 = vmul.f32 %v615, 0.2
    %v744 = vmul.f32 %v616, 0.2
    %v745 = vmul.f32 %v617, 0.2
    %v746 = vmul.f32 %v618, 0.2
    %v747 = vmul.f32 %v619, 0.2
    %v748 = vmul.f32 %v620, 0.2
    %v749 = vmul.f32 %v621, 0.2
    %v750 = vmul.f32 %v622, 0.2
    %v751 = vmul.f32 %v623, 0.2
    %v752 = vmul.f32 %v624, 0.2
    %v753 = vmul.f32 %v625, 0.2
    %v754 = vmul.f32 %v626, 0.2
    %v755 = vmul.f32 %v627, 0.2
    %v756 = vmul.f32 %v628, 0.2
    %v757 = vmul.f32 %v629, 0.2
    %v758 = vsel %vm630, %v566, %v694
    %v759 = vsel %vm631, %v567, %v695
    %v760 = vsel %vm632, %v568, %v696
    %v761 = vsel %vm633, %v569, %v697
    %v762 = vsel %vm634, %v570, %v698
    %v763 = vsel %vm635, %v571, %v699
    %v764 = vsel %vm636, %v572, %v700
    %v765 = vsel %vm637, %v573, %v701
    %v766 = vsel %vm638, %v574, %v702
    %v767 = vsel %vm639, %v575, %v703
    %v768 = vsel %vm640, %v576, %v704
    %v769 = vsel %vm641, %v577, %v705
    %v770 = vsel %vm642, %v578, %v706
    %v771 = vsel %vm643, %v579, %v707
    %v772 = vsel %vm644, %v580, %v708
    %v773 = vsel %vm645, %v581, %v709
    %v774 = vsel %vm646, %v582, %v710
    %v775 = vsel %vm647, %v583, %v711
    %v776 = vsel %vm648, %v584, %v712
    %v777 = vsel %vm649, %v585, %v713
    %v778 = vsel %vm650, %v586, %v714
    %v779 = vsel %vm651, %v587, %v715
    %v780 = vsel %vm652, %v588, %v716
    %v781 = vsel %vm653, %v589, %v717
    %v782 = vsel %vm654, %v590, %v718
    %v783 = vsel %vm655, %v591, %v719
    %v784 = vsel %vm656, %v592, %v720
    %v785 = vsel %vm657, %v593, %v721
    %v786 = vsel %vm658, %v594, %v722
    %v787 = vsel %vm659, %v595, %v723
    %v788 = vsel %vm660, %v596, %v724
    %v789 = vsel %vm661, %v597, %v725
    %v790 = vsel %vm662, %v598, %v726
    %v791 = vsel %vm663, %v599, %v727
    %v792 = vsel %vm664, %v600, %v728
    %v793 = vsel %vm665, %v601, %v729
    %v794 = vsel %vm666, %v602, %v730
    %v795 = vsel %vm667, %v603, %v731
    %v796 = vsel %vm668, %v604, %v732
    %v797 = vsel %vm669, %v605, %v733
    %v798 = vsel %vm670, %v606, %v734
    %v799 = vsel %vm671, %v607, %v735
    %v800 = vsel %vm672, %v608, %v736
    %v801 = vsel %vm673, %v609, %v737
    %v802 = vsel %vm674, %v610, %v738
    %v803 = vsel %vm675, %v611, %v739
    %v804 = vsel %vm676, %v612, %v740
    %v805 = vsel %vm677, %v613, %v741
    %v806 = vsel %vm678, %v614, %v742
    %v807 = vsel %vm679, %v615, %v743
    %v808 = vsel %vm680, %v616, %v744
    %v809 = vsel %vm681, %v617, %v745
    %v810 = vsel %vm682, %v618, %v746
    %v811 = vsel %vm683, %v619, %v747
    %v812 = vsel %vm684, %v620, %v748
    %v813 = vsel %vm685, %v621, %v749
    %v814 = vsel %vm686, %v622, %v750
    %v815 = vsel %vm687, %v623, %v751
    %v816 = vsel %vm688, %v624, %v752
    %v817 = vsel %vm689, %v625, %v753
    %v818 = vsel %vm690, %v626, %v754
    %v819 = vsel %vm691, %v627, %v755
    %v820 = vsel %vm692, %v628, %v756
    %v821 = vsel %vm693, %v629, %v757
    %v822 = vld [vmem:[#allocation6] sm:$0xff]
    %v823 = vld [vmem:[#allocation6 + $0x8] sm:$0xff]
    %v824 = vld [vmem:[#allocation6 + $0x10] sm:$0xff]
    %v825 = vld [vmem:[#allocation6 + $0x18] sm:$0xff]
    %v826 = vld [vmem:[#allocation6 + $0x20] sm:$0xff]
    %v827 = vld [vmem:[#allocation6 + $0x28] sm:$0xff]
    %v828 = vld [vmem:[#allocation6 + $0x30] sm:$0xff]
    %v829 = vld [vmem:[#allocation6 + $0x38] sm:$0xff]
    %v830 = vld [vmem:[#allocation6 + $0x40] sm:$0xff]
    %v831 = vld [vmem:[#allocation6 + $0x48] sm:$0xff]
    %v832 = vld [vmem:[#allocation6 + $0x50] sm:$0xff]
    %v833 = vld [vmem:[#allocation6 + $0x58] sm:$0xff]
    %v834 = vld [vmem:[#allocation6 + $0x60] sm:$0xff]
    %v835 = vld [vmem:[#allocation6 + $0x68] sm:$0xff]
    %v836 = vld [vmem:[#allocation6 + $0x70] sm:$0xff]
    %v837 = vld [vmem:[#allocation6 + $0x78] sm:$0xff]
    %v838 = vld [vmem:[#allocation6 + $0x80] sm:$0xff]
    %v839 = vld [vmem:[#allocation6 + $0x88] sm:$0xff]
    %v840 = vld [vmem:[#allocation6 + $0x90] sm:$0xff]
    %v841 = vld [vmem:[#allocation6 + $0x98] sm:$0xff]
    %v842 = vld [vmem:[#allocation6 + $0xa0] sm:$0xff]
    %v843 = vld [vmem:[#allocation6 + $0xa8] sm:$0xff]
    %v844 = vld [vmem:[#allocation6 + $0xb0] sm:$0xff]
    %v845 = vld [vmem:[#allocation6 + $0xb8] sm:$0xff]
    %v846 = vld [vmem:[#allocation6 + $0xc0] sm:$0xff]
    %v847 = vld [vmem:[#allocation6 + $0xc8] sm:$0xff]
    %v848 = vld [vmem:[#allocation6 + $0xd0] sm:$0xff]
    %v849 = vld [vmem:[#allocation6 + $0xd8] sm:$0xff]
    %v850 = vld [vmem:[#allocation6 + $0xe0] sm:$0xff]
    %v851 = vld [vmem:[#allocation6 + $0xe8] sm:$0xff]
    %v852 = vld [vmem:[#allocation6 + $0xf0] sm:$0xff]
    %v853 = vld [vmem:[#allocation6 + $0xf8] sm:$0xff]
    %v854 = vld [vmem:[#allocation6 + $0x100] sm:$0xff]
    %v855 = vld [vmem:[#allocation6 + $0x108] sm:$0xff]
    %v856 = vld [vmem:[#allocation6 + $0x110] sm:$0xff]
    %v857 = vld [vmem:[#allocation6 + $0x118] sm:$0xff]
    %v858 = vld [vmem:[#allocation6 + $0x120] sm:$0xff]
    %v859 = vld [vmem:[#allocation6 + $0x128] sm:$0xff]
    %v860 = vld [vmem:[#allocation6 + $0x130] sm:$0xff]
    %v861 = vld [vmem:[#allocation6 + $0x138] sm:$0xff]
    %v862 = vld [vmem:[#allocation6 + $0x140] sm:$0xff]
    %v863 = vld [vmem:[#allocation6 + $0x148] sm:$0xff]
    %v864 = vld [vmem:[#allocation6 + $0x150] sm:$0xff]
    %v865 = vld [vmem:[#allocation6 + $0x158] sm:$0xff]
    %v866 = vld [vmem:[#allocation6 + $0x160] sm:$0xff]
    %v867 = vld [vmem:[#allocation6 + $0x168] sm:$0xff]
    %v868 = vld [vmem:[#allocation6 + $0x170] sm:$0xff]
    %v869 = vld [vmem:[#allocation6 + $0x178] sm:$0xff]
    %v870 = vld [vmem:[#allocation6 + $0x180] sm:$0xff]
    %v871 = vld [vmem:[#allocation6 + $0x188] sm:$0xff]
    %v872 = vld [vmem:[#allocation6 + $0x190] sm:$0xff]
    %v873 = vld [vmem:[#allocation6 + $0x198] sm:$0xff]
    %v874 = vld [vmem:[#allocation6 + $0x1a0] sm:$0xff]
    %v875 = vld [vmem:[#allocation6 + $0x1a8] sm:$0xff]
    %v876 = vld [vmem:[#allocation6 + $0x1b0] sm:$0xff]
    %v877 = vld [vmem:[#allocation6 + $0x1b8] sm:$0xff]
    %v878 = vld [vmem:[#allocation6 + $0x1c0] sm:$0xff]
    %v879 = vld [vmem:[#allocation6 + $0x1c8] sm:$0xff]
    %v880 = vld [vmem:[#allocation6 + $0x1d0] sm:$0xff]
    %v881 = vld [vmem:[#allocation6 + $0x1d8] sm:$0xff]
    %v882 = vld [vmem:[#allocation6 + $0x1e0] sm:$0xff]
    %v883 = vld [vmem:[#allocation6 + $0x1e8] sm:$0xff]
    %v884 = vld [vmem:[#allocation6 + $0x1f0] sm:$0xff]
    %v885 = vld [vmem:[#allocation6 + $0x1f8] sm:$0xff]
    %v886 = vld [vmem:[%s7] sm:$0x3]
    %v888 = vlaneseq
    %v889 = vshrl.u32 %v888, 7
    %v890 = vsub.s32 0, %v889
    %v891 = vrot.slane %v886, %v890
    %v892 = vlaneseq
    %v893 = vshrl.u32 %v892, 7
    %v894 = vsub.s32 1, %v893
    %v895 = vrot.slane %v886, %v894
    %898 = vmatprep.subr.mxu0 %v853
    %899 = vmatpush1.msra.mxu0 %v852
    %900 = vmatprep.subr.mxu0 %v851
    %901 = vmatpush1.msra.mxu0 %v850
    %902 = vmatprep.subr.mxu0 %v849
    %903 = vmatpush1.msra.mxu0 %v848
    %904 = vmatprep.subr.mxu0 %v847
    %905 = vmatpush1.msra.mxu0 %v846
    %906 = vmatprep.subr.mxu0 %v845
    %907 = vmatpush1.msra.mxu0 %v844
    %908 = vmatprep.subr.mxu0 %v843
    %909 = vmatpush1.msra.mxu0 %v842
    %910 = vmatprep.subr.mxu0 %v841
    %911 = vmatpush1.msra.mxu0 %v840
    %912 = vmatprep.subr.mxu0 %v839
    %913 = vmatpush1.msra.mxu0 %v838
    %914 = vmatprep.subr.mxu0 %v837
    %915 = vmatpush1.msra.mxu0 %v836
    %916 = vmatprep.subr.mxu0 %v835
    %917 = vmatpush1.msra.mxu0 %v834
    %918 = vmatprep.subr.mxu0 %v833
    %919 = vmatpush1.msra.mxu0 %v832
    %920 = vmatprep.subr.mxu0 %v831
    %921 = vmatpush1.msra.mxu0 %v830
    %922 = vmatprep.subr.mxu0 %v829
    %923 = vmatpush1.msra.mxu0 %v828
    %924 = vmatprep.subr.mxu0 %v827
    %925 = vmatpush1.msra.mxu0 %v826
    %926 = vmatprep.subr.mxu0 %v825
    %927 = vmatpush1.msra.mxu0 %v824
    %928 = vmatprep.subr.mxu0 %v823
    %929 = vmatpush1.msra.mxu0 %v822
    %930 = vmatprep.subr.mxu0 %v885
    %931 = vmatpush2.msra.mxu0 %v884
    %932 = vmatprep.subr.mxu0 %v883
    %933 = vmatpush2.msra.mxu0 %v882
    %934 = vmatprep.subr.mxu0 %v881
    %935 = vmatpush2.msra.mxu0 %v880
    %936 = vmatprep.subr.mxu0 %v879
    %937 = vmatpush2.msra.mxu0 %v878
    %938 = vmatprep.subr.mxu0 %v877
    %939 = vmatpush2.msra.mxu0 %v876
    %940 = vmatprep.subr.mxu0 %v875
    %941 = vmatpush2.msra.mxu0 %v874
    %942 = vmatprep.subr.mxu0 %v873
    %943 = vmatpush2.msra.mxu0 %v872
    %944 = vmatprep.subr.mxu0 %v871
    %945 = vmatpush2.msra.mxu0 %v870
    %946 = vmatprep.subr.mxu0 %v869
    %947 = vmatpush2.msra.mxu0 %v868
    %948 = vmatprep.subr.mxu0 %v867
    %949 = vmatpush2.msra.mxu0 %v866
    %950 = vmatprep.subr.mxu0 %v865
    %951 = vmatpush2.msra.mxu0 %v864
    %952 = vmatprep.subr.mxu0 %v863
    %953 = vmatpush2.msra.mxu0 %v862
    %954 = vmatprep.subr.mxu0 %v861
    %955 = vmatpush2.msra.mxu0 %v860
    %956 = vmatprep.subr.mxu0 %v859
    %957 = vmatpush2.msra.mxu0 %v858
    %958 = vmatprep.subr.mxu0 %v857
    %959 = vmatpush2.msra.mxu0 %v856
    %960 = vmatprep.subr.mxu0 %v855
    %961 = vmatpush2.msra.mxu0 %v854
    %962 = vmatprep.mubr.f32.mxu0 %v759
    %963 = vmatmul.mubr.f32.gmra.mxu0 %v758
    %v964 = vpop.f32.mrf.mxu0
    %v965 = vadd.f32 %v891, %v964
    %v966 = vpop.f32.mrf.mxu0
    %v967 = vadd.f32 %v895, %v966
    %968 = vmatprep.mubr.f32.mxu0 %v761
    %969 = vmatmul.mubr.f32.gmra.mxu0 %v760
    %v970 = vpop.f32.mrf.mxu0
    %v971 = vadd.f32 %v891, %v970
    %v972 = vpop.f32.mrf.mxu0
    %v973 = vadd.f32 %v895, %v972
    %974 = vmatprep.mubr.f32.mxu0 %v763
    %975 = vmatmul.mubr.f32.gmra.mxu0 %v762
    %v976 = vpop.f32.mrf.mxu0
    %v977 = vadd.f32 %v891, %v976
    %v978 = vpop.f32.mrf.mxu0
    %v979 = vadd.f32 %v895, %v978
    %980 = vmatprep.mubr.f32.mxu0 %v765
    %981 = vmatmul.mubr.f32.gmra.mxu0 %v764
    %v982 = vpop.f32.mrf.mxu0
    %v983 = vadd.f32 %v891, %v982
    %v984 = vpop.f32.mrf.mxu0
    %v985 = vadd.f32 %v895, %v984
    %986 = vmatprep.mubr.f32.mxu0 %v767
    %987 = vmatmul.mubr.f32.gmra.mxu0 %v766
    %v988 = vpop.f32.mrf.mxu0
    %v989 = vadd.f32 %v891, %v988
    %v990 = vpop.f32.mrf.mxu0
    %v991 = vadd.f32 %v895, %v990
    %992 = vmatprep.mubr.f32.mxu0 %v769
    %993 = vmatmul.mubr.f32.gmra.mxu0 %v768
    %v994 = vpop.f32.mrf.mxu0
    %v995 = vadd.f32 %v891, %v994
    %v996 = vpop.f32.mrf.mxu0
    %v997 = vadd.f32 %v895, %v996
    %998 = vmatprep.mubr.f32.mxu0 %v771
    %999 = vmatmul.mubr.f32.gmra.mxu0 %v770
    %v1000 = vpop.f32.mrf.mxu0
    %v1001 = vadd.f32 %v891, %v1000
    %v1002 = vpop.f32.mrf.mxu0
    %v1003 = vadd.f32 %v895, %v1002
    %1004 = vmatprep.mubr.f32.mxu0 %v773
    %1005 = vmatmul.mubr.f32.gmra.mxu0 %v772
    %v1006 = vpop.f32.mrf.mxu0
    %v1007 = vadd.f32 %v891, %v1006
    %v1008 = vpop.f32.mrf.mxu0
    %v1009 = vadd.f32 %v895, %v1008
    %1010 = vmatprep.mubr.f32.mxu0 %v775
    %1011 = vmatmul.mubr.f32.gmra.mxu0 %v774
    %v1012 = vpop.f32.mrf.mxu0
    %v1013 = vadd.f32 %v891, %v1012
    %v1014 = vpop.f32.mrf.mxu0
    %v1015 = vadd.f32 %v895, %v1014
    %1016 = vmatprep.mubr.f32.mxu0 %v777
    %1017 = vmatmul.mubr.f32.gmra.mxu0 %v776
    %v1018 = vpop.f32.mrf.mxu0
    %v1019 = vadd.f32 %v891, %v1018
    %v1020 = vpop.f32.mrf.mxu0
    %v1021 = vadd.f32 %v895, %v1020
    %1022 = vmatprep.mubr.f32.mxu0 %v779
    %1023 = vmatmul.mubr.f32.gmra.mxu0 %v778
    %v1024 = vpop.f32.mrf.mxu0
    %v1025 = vadd.f32 %v891, %v1024
    %v1026 = vpop.f32.mrf.mxu0
    %v1027 = vadd.f32 %v895, %v1026
    %1028 = vmatprep.mubr.f32.mxu0 %v781
    %1029 = vmatmul.mubr.f32.gmra.mxu0 %v780
    %v1030 = vpop.f32.mrf.mxu0
    %v1031 = vadd.f32 %v891, %v1030
    %v1032 = vpop.f32.mrf.mxu0
    %v1033 = vadd.f32 %v895, %v1032
    %1034 = vmatprep.mubr.f32.mxu0 %v783
    %1035 = vmatmul.mubr.f32.gmra.mxu0 %v782
    %v1036 = vpop.f32.mrf.mxu0
    %v1037 = vadd.f32 %v891, %v1036
    %v1038 = vpop.f32.mrf.mxu0
    %v1039 = vadd.f32 %v895, %v1038
    %1040 = vmatprep.mubr.f32.mxu0 %v785
    %1041 = vmatmul.mubr.f32.gmra.mxu0 %v784
    %v1042 = vpop.f32.mrf.mxu0
    %v1043 = vadd.f32 %v891, %v1042
    %v1044 = vpop.f32.mrf.mxu0
    %v1045 = vadd.f32 %v895, %v1044
    %1046 = vmatprep.mubr.f32.mxu0 %v787
    %1047 = vmatmul.mubr.f32.gmra.mxu0 %v786
    %v1048 = vpop.f32.mrf.mxu0
    %v1049 = vadd.f32 %v891, %v1048
    %v1050 = vpop.f32.mrf.mxu0
    %v1051 = vadd.f32 %v895, %v1050
    %1052 = vmatprep.mubr.f32.mxu0 %v789
    %1053 = vmatmul.mubr.f32.gmra.mxu0 %v788
    %v1054 = vpop.f32.mrf.mxu0
    %v1055 = vadd.f32 %v891, %v1054
    %v1056 = vpop.f32.mrf.mxu0
    %v1057 = vadd.f32 %v895, %v1056
    %1058 = vmatprep.mubr.f32.mxu0 %v791
    %1059 = vmatmul.mubr.f32.gmra.mxu0 %v790
    %v1060 = vpop.f32.mrf.mxu0
    %v1061 = vadd.f32 %v891, %v1060
    %v1062 = vpop.f32.mrf.mxu0
    %v1063 = vadd.f32 %v895, %v1062
    %1064 = vmatprep.mubr.f32.mxu0 %v793
    %1065 = vmatmul.mubr.f32.gmra.mxu0 %v792
    %v1066 = vpop.f32.mrf.mxu0
    %v1067 = vadd.f32 %v891, %v1066
    %v1068 = vpop.f32.mrf.mxu0
    %v1069 = vadd.f32 %v895, %v1068
    %1070 = vmatprep.mubr.f32.mxu0 %v795
    %1071 = vmatmul.mubr.f32.gmra.mxu0 %v794
    %v1072 = vpop.f32.mrf.mxu0
    %v1073 = vadd.f32 %v891, %v1072
    %v1074 = vpop.f32.mrf.mxu0
    %v1075 = vadd.f32 %v895, %v1074
    %1076 = vmatprep.mubr.f32.mxu0 %v797
    %1077 = vmatmul.mubr.f32.gmra.mxu0 %v796
    %v1078 = vpop.f32.mrf.mxu0
    %v1079 = vadd.f32 %v891, %v1078
    %v1080 = vpop.f32.mrf.mxu0
    %v1081 = vadd.f32 %v895, %v1080
    %1082 = vmatprep.mubr.f32.mxu0 %v799
    %1083 = vmatmul.mubr.f32.gmra.mxu0 %v798
    %v1084 = vpop.f32.mrf.mxu0
    %v1085 = vadd.f32 %v891, %v1084
    %v1086 = vpop.f32.mrf.mxu0
    %v1087 = vadd.f32 %v895, %v1086
    %1088 = vmatprep.mubr.f32.mxu0 %v801
    %1089 = vmatmul.mubr.f32.gmra.mxu0 %v800
    %v1090 = vpop.f32.mrf.mxu0
    %v1091 = vadd.f32 %v891, %v1090
    %v1092 = vpop.f32.mrf.mxu0
    %v1093 = vadd.f32 %v895, %v1092
    %1094 = vmatprep.mubr.f32.mxu0 %v803
    %1095 = vmatmul.mubr.f32.gmra.mxu0 %v802
    %v1096 = vpop.f32.mrf.mxu0
    %v1097 = vadd.f32 %v891, %v1096
    %v1098 = vpop.f32.mrf.mxu0
    %v1099 = vadd.f32 %v895, %v1098
    %1100 = vmatprep.mubr.f32.mxu0 %v805
    %1101 = vmatmul.mubr.f32.gmra.mxu0 %v804
    %v1102 = vpop.f32.mrf.mxu0
    %v1103 = vadd.f32 %v891, %v1102
    %v1104 = vpop.f32.mrf.mxu0
    %v1105 = vadd.f32 %v895, %v1104
    %1106 = vmatprep.mubr.f32.mxu0 %v807
    %1107 = vmatmul.mubr.f32.gmra.mxu0 %v806
    %v1108 = vpop.f32.mrf.mxu0
    %v1109 = vadd.f32 %v891, %v1108
    %v1110 = vpop.f32.mrf.mxu0
    %v1111 = vadd.f32 %v895, %v1110
    %1112 = vmatprep.mubr.f32.mxu0 %v809
    %1113 = vmatmul.mubr.f32.gmra.mxu0 %v808
    %v1114 = vpop.f32.mrf.mxu0
    %v1115 = vadd.f32 %v891, %v1114
    %v1116 = vpop.f32.mrf.mxu0
    %v1117 = vadd.f32 %v895, %v1116
    %1118 = vmatprep.mubr.f32.mxu0 %v811
    %1119 = vmatmul.mubr.f32.gmra.mxu0 %v810
    %v1120 = vpop.f32.mrf.mxu0
    %v1121 = vadd.f32 %v891, %v1120
    %v1122 = vpop.f32.mrf.mxu0
    %v1123 = vadd.f32 %v895, %v1122
    %1124 = vmatprep.mubr.f32.mxu0 %v813
    %1125 = vmatmul.mubr.f32.gmra.mxu0 %v812
    %v1126 = vpop.f32.mrf.mxu0
    %v1127 = vadd.f32 %v891, %v1126
    %v1128 = vpop.f32.mrf.mxu0
    %v1129 = vadd.f32 %v895, %v1128
    %1130 = vmatprep.mubr.f32.mxu0 %v815
    %1131 = vmatmul.mubr.f32.gmra.mxu0 %v814
    %v1132 = vpop.f32.mrf.mxu0
    %v1133 = vadd.f32 %v891, %v1132
    %v1134 = vpop.f32.mrf.mxu0
    %v1135 = vadd.f32 %v895, %v1134
    %1136 = vmatprep.mubr.f32.mxu0 %v817
    %1137 = vmatmul.mubr.f32.gmra.mxu0 %v816
    %v1138 = vpop.f32.mrf.mxu0
    %v1139 = vadd.f32 %v891, %v1138
    %v1140 = vpop.f32.mrf.mxu0
    %v1141 = vadd.f32 %v895, %v1140
    %1142 = vmatprep.mubr.f32.mxu0 %v819
    %1143 = vmatmul.mubr.f32.gmra.mxu0 %v818
    %v1144 = vpop.f32.mrf.mxu0
    %v1145 = vadd.f32 %v891, %v1144
    %v1146 = vpop.f32.mrf.mxu0
    %v1147 = vadd.f32 %v895, %v1146
    %1148 = vmatprep.mubr.f32.mxu0 %v821
    %1149 = vmatmul.mubr.f32.gmra.mxu0 %v820
    %v1150 = vpop.f32.mrf.mxu0
    %v1151 = vadd.f32 %v891, %v1150
    %v1152 = vpop.f32.mrf.mxu0
    %v1153 = vadd.f32 %v895, %v1152
    %1154 = vdwg.mxu0
    %v1155 = vld [vmem:[#allocation2] sm:$0xff]
    %v1156 = vld [vmem:[#allocation2 + $0x8] sm:$0xff]
    %v1157 = vld [vmem:[#allocation2 + $0x10] sm:$0xff]
    %v1158 = vld [vmem:[#allocation2 + $0x18] sm:$0xff]
    %v1159 = vld [vmem:[#allocation2 + $0x20] sm:$0xff]
    %v1160 = vld [vmem:[#allocation2 + $0x28] sm:$0xff]
    %v1161 = vld [vmem:[#allocation2 + $0x30] sm:$0xff]
    %v1162 = vld [vmem:[#allocation2 + $0x38] sm:$0xff]
    %v1163 = vld [vmem:[#allocation2 + $0x40] sm:$0xff]
    %v1164 = vld [vmem:[#allocation2 + $0x48] sm:$0xff]
    %v1165 = vld [vmem:[#allocation2 + $0x50] sm:$0xff]
    %v1166 = vld [vmem:[#allocation2 + $0x58] sm:$0xff]
    %v1167 = vld [vmem:[#allocation2 + $0x60] sm:$0xff]
    %v1168 = vld [vmem:[#allocation2 + $0x68] sm:$0xff]
    %v1169 = vld [vmem:[#allocation2 + $0x70] sm:$0xff]
    %v1170 = vld [vmem:[#allocation2 + $0x78] sm:$0xff]
    %v1171 = vld [vmem:[#allocation2 + $0x80] sm:$0xff]
    %v1172 = vld [vmem:[#allocation2 + $0x88] sm:$0xff]
    %v1173 = vld [vmem:[#allocation2 + $0x90] sm:$0xff]
    %v1174 = vld [vmem:[#allocation2 + $0x98] sm:$0xff]
    %v1175 = vld [vmem:[#allocation2 + $0xa0] sm:$0xff]
    %v1176 = vld [vmem:[#allocation2 + $0xa8] sm:$0xff]
    %v1177 = vld [vmem:[#allocation2 + $0xb0] sm:$0xff]
    %v1178 = vld [vmem:[#allocation2 + $0xb8] sm:$0xff]
    %v1179 = vld [vmem:[#allocation2 + $0xc0] sm:$0xff]
    %v1180 = vld [vmem:[#allocation2 + $0xc8] sm:$0xff]
    %v1181 = vld [vmem:[#allocation2 + $0xd0] sm:$0xff]
    %v1182 = vld [vmem:[#allocation2 + $0xd8] sm:$0xff]
    %v1183 = vld [vmem:[#allocation2 + $0xe0] sm:$0xff]
    %v1184 = vld [vmem:[#allocation2 + $0xe8] sm:$0xff]
    %v1185 = vld [vmem:[#allocation2 + $0xf0] sm:$0xff]
    %v1186 = vld [vmem:[#allocation2 + $0xf8] sm:$0xff]
    %v1187 = vld [vmem:[#allocation2 + $0x100] sm:$0xff]
    %v1188 = vld [vmem:[#allocation2 + $0x108] sm:$0xff]
    %v1189 = vld [vmem:[#allocation2 + $0x110] sm:$0xff]
    %v1190 = vld [vmem:[#allocation2 + $0x118] sm:$0xff]
    %v1191 = vld [vmem:[#allocation2 + $0x120] sm:$0xff]
    %v1192 = vld [vmem:[#allocation2 + $0x128] sm:$0xff]
    %v1193 = vld [vmem:[#allocation2 + $0x130] sm:$0xff]
    %v1194 = vld [vmem:[#allocation2 + $0x138] sm:$0xff]
    %v1195 = vld [vmem:[#allocation2 + $0x140] sm:$0xff]
    %v1196 = vld [vmem:[#allocation2 + $0x148] sm:$0xff]
    %v1197 = vld [vmem:[#allocation2 + $0x150] sm:$0xff]
    %v1198 = vld [vmem:[#allocation2 + $0x158] sm:$0xff]
    %v1199 = vld [vmem:[#allocation2 + $0x160] sm:$0xff]
    %v1200 = vld [vmem:[#allocation2 + $0x168] sm:$0xff]
    %v1201 = vld [vmem:[#allocation2 + $0x170] sm:$0xff]
    %v1202 = vld [vmem:[#allocation2 + $0x178] sm:$0xff]
    %v1203 = vld [vmem:[#allocation2 + $0x180] sm:$0xff]
    %v1204 = vld [vmem:[#allocation2 + $0x188] sm:$0xff]
    %v1205 = vld [vmem:[#allocation2 + $0x190] sm:$0xff]
    %v1206 = vld [vmem:[#allocation2 + $0x198] sm:$0xff]
    %v1207 = vld [vmem:[#allocation2 + $0x1a0] sm:$0xff]
    %v1208 = vld [vmem:[#allocation2 + $0x1a8] sm:$0xff]
    %v1209 = vld [vmem:[#allocation2 + $0x1b0] sm:$0xff]
    %v1210 = vld [vmem:[#allocation2 + $0x1b8] sm:$0xff]
    %v1211 = vld [vmem:[#allocation2 + $0x1c0] sm:$0xff]
    %v1212 = vld [vmem:[#allocation2 + $0x1c8] sm:$0xff]
    %v1213 = vld [vmem:[#allocation2 + $0x1d0] sm:$0xff]
    %v1214 = vld [vmem:[#allocation2 + $0x1d8] sm:$0xff]
    %v1215 = vld [vmem:[#allocation2 + $0x1e0] sm:$0xff]
    %v1216 = vld [vmem:[#allocation2 + $0x1e8] sm:$0xff]
    %v1217 = vld [vmem:[#allocation2 + $0x1f0] sm:$0xff]
    %v1218 = vld [vmem:[#allocation2 + $0x1f8] sm:$0xff]
    %v1219 = vadd.f32 %v965, %v1155
    %v1220 = vadd.f32 %v967, %v1156
    %v1221 = vadd.f32 %v971, %v1157
    %v1222 = vadd.f32 %v973, %v1158
    %v1223 = vadd.f32 %v977, %v1159
    %v1224 = vadd.f32 %v979, %v1160
    %v1225 = vadd.f32 %v983, %v1161
    %v1226 = vadd.f32 %v985, %v1162
    %v1227 = vadd.f32 %v989, %v1163
    %v1228 = vadd.f32 %v991, %v1164
    %v1229 = vadd.f32 %v995, %v1165
    %v1230 = vadd.f32 %v997, %v1166
    %v1231 = vadd.f32 %v1001, %v1167
    %v1232 = vadd.f32 %v1003, %v1168
    %v1233 = vadd.f32 %v1007, %v1169
    %v1234 = vadd.f32 %v1009, %v1170
    %v1235 = vadd.f32 %v1013, %v1171
    %v1236 = vadd.f32 %v1015, %v1172
    %v1237 = vadd.f32 %v1019, %v1173
    %v1238 = vadd.f32 %v1021, %v1174
    %v1239 = vadd.f32 %v1025, %v1175
    %v1240 = vadd.f32 %v1027, %v1176
    %v1241 = vadd.f32 %v1031, %v1177
    %v1242 = vadd.f32 %v1033, %v1178
    %v1243 = vadd.f32 %v1037, %v1179
    %v1244 = vadd.f32 %v1039, %v1180
    %v1245 = vadd.f32 %v1043, %v1181
    %v1246 = vadd.f32 %v1045, %v1182
    %v1247 = vadd.f32 %v1049, %v1183
    %v1248 = vadd.f32 %v1051, %v1184
    %v1249 = vadd.f32 %v1055, %v1185
    %v1250 = vadd.f32 %v1057, %v1186
    %v1251 = vadd.f32 %v1061, %v1187
    %v1252 = vadd.f32 %v1063, %v1188
    %v1253 = vadd.f32 %v1067, %v1189
    %v1254 = vadd.f32 %v1069, %v1190
    %v1255 = vadd.f32 %v1073, %v1191
    %v1256 = vadd.f32 %v1075, %v1192
    %v1257 = vadd.f32 %v1079, %v1193
    %v1258 = vadd.f32 %v1081, %v1194
    %v1259 = vadd.f32 %v1085, %v1195
    %v1260 = vadd.f32 %v1087, %v1196
    %v1261 = vadd.f32 %v1091, %v1197
    %v1262 = vadd.f32 %v1093, %v1198
    %v1263 = vadd.f32 %v1097, %v1199
    %v1264 = vadd.f32 %v1099, %v1200
    %v1265 = vadd.f32 %v1103, %v1201
    %v1266 = vadd.f32 %v1105, %v1202
    %v1267 = vadd.f32 %v1109, %v1203
    %v1268 = vadd.f32 %v1111, %v1204
    %v1269 = vadd.f32 %v1115, %v1205
    %v1270 = vadd.f32 %v1117, %v1206
    %v1271 = vadd.f32 %v1121, %v1207
    %v1272 = vadd.f32 %v1123, %v1208
    %v1273 = vadd.f32 %v1127, %v1209
    %v1274 = vadd.f32 %v1129, %v1210
    %v1275 = vadd.f32 %v1133, %v1211
    %v1276 = vadd.f32 %v1135, %v1212
    %v1277 = vadd.f32 %v1139, %v1213
    %v1278 = vadd.f32 %v1141, %v1214
    %v1279 = vadd.f32 %v1145, %v1215
    %v1280 = vadd.f32 %v1147, %v1216
    %v1281 = vadd.f32 %v1151, %v1217
    %v1282 = vadd.f32 %v1153, %v1218
    %vm1283 = vcmp.gt.f32.partialorder %v1219, 0.0
    %vm1284 = vcmp.gt.f32.partialorder %v1220, 0.0
    %vm1285 = vcmp.gt.f32.partialorder %v1221, 0.0
    %vm1286 = vcmp.gt.f32.partialorder %v1222, 0.0
    %vm1287 = vcmp.gt.f32.partialorder %v1223, 0.0
    %vm1288 = vcmp.gt.f32.partialorder %v1224, 0.0
    %vm1289 = vcmp.gt.f32.partialorder %v1225, 0.0
    %vm1290 = vcmp.gt.f32.partialorder %v1226, 0.0
    %vm1291 = vcmp.gt.f32.partialorder %v1227, 0.0
    %vm1292 = vcmp.gt.f32.partialorder %v1228, 0.0
    %vm1293 = vcmp.gt.f32.partialorder %v1229, 0.0
    %vm1294 = vcmp.gt.f32.partialorder %v1230, 0.0
    %vm1295 = vcmp.gt.f32.partialorder %v1231, 0.0
    %vm1296 = vcmp.gt.f32.partialorder %v1232, 0.0
    %vm1297 = vcmp.gt.f32.partialorder %v1233, 0.0
    %vm1298 = vcmp.gt.f32.partialorder %v1234, 0.0
    %vm1299 = vcmp.gt.f32.partialorder %v1235, 0.0
    %vm1300 = vcmp.gt.f32.partialorder %v1236, 0.0
    %vm1301 = vcmp.gt.f32.partialorder %v1237, 0.0
    %vm1302 = vcmp.gt.f32.partialorder %v1238, 0.0
    %vm1303 = vcmp.gt.f32.partialorder %v1239, 0.0
    %vm1304 = vcmp.gt.f32.partialorder %v1240, 0.0
    %vm1305 = vcmp.gt.f32.partialorder %v1241, 0.0
    %vm1306 = vcmp.gt.f32.partialorder %v1242, 0.0
    %vm1307 = vcmp.gt.f32.partialorder %v1243, 0.0
    %vm1308 = vcmp.gt.f32.partialorder %v1244, 0.0
    %vm1309 = vcmp.gt.f32.partialorder %v1245, 0.0
    %vm1310 = vcmp.gt.f32.partialorder %v1246, 0.0
    %vm1311 = vcmp.gt.f32.partialorder %v1247, 0.0
    %vm1312 = vcmp.gt.f32.partialorder %v1248, 0.0
    %vm1313 = vcmp.gt.f32.partialorder %v1249, 0.0
    %vm1314 = vcmp.gt.f32.partialorder %v1250, 0.0
    %vm1315 = vcmp.gt.f32.partialorder %v1251, 0.0
    %vm1316 = vcmp.gt.f32.partialorder %v1252, 0.0
    %vm1317 = vcmp.gt.f32.partialorder %v1253, 0.0
    %vm1318 = vcmp.gt.f32.partialorder %v1254, 0.0
    %vm1319 = vcmp.gt.f32.partialorder %v1255, 0.0
    %vm1320 = vcmp.gt.f32.partialorder %v1256, 0.0
    %vm1321 = vcmp.gt.f32.partialorder %v1257, 0.0
    %vm1322 = vcmp.gt.f32.partialorder %v1258, 0.0
    %vm1323 = vcmp.gt.f32.partialorder %v1259, 0.0
    %vm1324 = vcmp.gt.f32.partialorder %v1260, 0.0
    %vm1325 = vcmp.gt.f32.partialorder %v1261, 0.0
    %vm1326 = vcmp.gt.f32.partialorder %v1262, 0.0
    %vm1327 = vcmp.gt.f32.partialorder %v1263, 0.0
    %vm1328 = vcmp.gt.f32.partialorder %v1264, 0.0
    %vm1329 = vcmp.gt.f32.partialorder %v1265, 0.0
    %vm1330 = vcmp.gt.f32.partialorder %v1266, 0.0
    %vm1331 = vcmp.gt.f32.partialorder %v1267, 0.0
    %vm1332 = vcmp.gt.f32.partialorder %v1268, 0.0
    %vm1333 = vcmp.gt.f32.partialorder %v1269, 0.0
    %vm1334 = vcmp.gt.f32.partialorder %v1270, 0.0
    %vm1335 = vcmp.gt.f32.partialorder %v1271, 0.0
    %vm1336 = vcmp.gt.f32.partialorder %v1272, 0.0
    %vm1337 = vcmp.gt.f32.partialorder %v1273, 0.0
    %vm1338 = vcmp.gt.f32.partialorder %v1274, 0.0
    %vm1339 = vcmp.gt.f32.partialorder %v1275, 0.0
    %vm1340 = vcmp.gt.f32.partialorder %v1276, 0.0
    %vm1341 = vcmp.gt.f32.partialorder %v1277, 0.0
    %vm1342 = vcmp.gt.f32.partialorder %v1278, 0.0
    %vm1343 = vcmp.gt.f32.partialorder %v1279, 0.0
    %vm1344 = vcmp.gt.f32.partialorder %v1280, 0.0
    %vm1345 = vcmp.gt.f32.partialorder %v1281, 0.0
    %vm1346 = vcmp.gt.f32.partialorder %v1282, 0.0
    %v1347 = vmul.f32 %v1219, 0.2
    %v1348 = vmul.f32 %v1220, 0.2
    %v1349 = vmul.f32 %v1221, 0.2
    %v1350 = vmul.f32 %v1222, 0.2
    %v1351 = vmul.f32 %v1223, 0.2
    %v1352 = vmul.f32 %v1224, 0.2
    %v1353 = vmul.f32 %v1225, 0.2
    %v1354 = vmul.f32 %v1226, 0.2
    %v1355 = vmul.f32 %v1227, 0.2
    %v1356 = vmul.f32 %v1228, 0.2
    %v1357 = vmul.f32 %v1229, 0.2
    %v1358 = vmul.f32 %v1230, 0.2
    %v1359 = vmul.f32 %v1231, 0.2
    %v1360 = vmul.f32 %v1232, 0.2
    %v1361 = vmul.f32 %v1233, 0.2
    %v1362 = vmul.f32 %v1234, 0.2
    %v1363 = vmul.f32 %v1235, 0.2
    %v1364 = vmul.f32 %v1236, 0.2
    %v1365 = vmul.f32 %v1237, 0.2
    %v1366 = vmul.f32 %v1238, 0.2
    %v1367 = vmul.f32 %v1239, 0.2
    %v1368 = vmul.f32 %v1240, 0.2
    %v1369 = vmul.f32 %v1241, 0.2
    %v1370 = vmul.f32 %v1242, 0.2
    %v1371 = vmul.f32 %v1243, 0.2
    %v1372 = vmul.f32 %v1244, 0.2
    %v1373 = vmul.f32 %v1245, 0.2
    %v1374 = vmul.f32 %v1246, 0.2
    %v1375 = vmul.f32 %v1247, 0.2
    %v1376 = vmul.f32 %v1248, 0.2
    %v1377 = vmul.f32 %v1249, 0.2
    %v1378 = vmul.f32 %v1250, 0.2
    %v1379 = vmul.f32 %v1251, 0.2
    %v1380 = vmul.f32 %v1252, 0.2
    %v1381 = vmul.f32 %v1253, 0.2
    %v1382 = vmul.f32 %v1254, 0.2
    %v1383 = vmul.f32 %v1255, 0.2
    %v1384 = vmul.f32 %v1256, 0.2
    %v1385 = vmul.f32 %v1257, 0.2
    %v1386 = vmul.f32 %v1258, 0.2
    %v1387 = vmul.f32 %v1259, 0.2
    %v1388 = vmul.f32 %v1260, 0.2
    %v1389 = vmul.f32 %v1261, 0.2
    %v1390 = vmul.f32 %v1262, 0.2
    %v1391 = vmul.f32 %v1263, 0.2
    %v1392 = vmul.f32 %v1264, 0.2
    %v1393 = vmul.f32 %v1265, 0.2
    %v1394 = vmul.f32 %v1266, 0.2
    %v1395 = vmul.f32 %v1267, 0.2
    %v1396 = vmul.f32 %v1268, 0.2
    %v1397 = vmul.f32 %v1269, 0.2
    %v1398 = vmul.f32 %v1270, 0.2
    %v1399 = vmul.f32 %v1271, 0.2
    %v1400 = vmul.f32 %v1272, 0.2
    %v1401 = vmul.f32 %v1273, 0.2
    %v1402 = vmul.f32 %v1274, 0.2
    %v1403 = vmul.f32 %v1275, 0.2
    %v1404 = vmul.f32 %v1276, 0.2
    %v1405 = vmul.f32 %v1277, 0.2
    %v1406 = vmul.f32 %v1278, 0.2
    %v1407 = vmul.f32 %v1279, 0.2
    %v1408 = vmul.f32 %v1280, 0.2
    %v1409 = vmul.f32 %v1281, 0.2
    %v1410 = vmul.f32 %v1282, 0.2
    %v1411 = vsel %vm1283, %v1219, %v1347
    %v1412 = vsel %vm1284, %v1220, %v1348
    %v1413 = vsel %vm1285, %v1221, %v1349
    %v1414 = vsel %vm1286, %v1222, %v1350
    %v1415 = vsel %vm1287, %v1223, %v1351
    %v1416 = vsel %vm1288, %v1224, %v1352
    %v1417 = vsel %vm1289, %v1225, %v1353
    %v1418 = vsel %vm1290, %v1226, %v1354
    %v1419 = vsel %vm1291, %v1227, %v1355
    %v1420 = vsel %vm1292, %v1228, %v1356
    %v1421 = vsel %vm1293, %v1229, %v1357
    %v1422 = vsel %vm1294, %v1230, %v1358
    %v1423 = vsel %vm1295, %v1231, %v1359
    %v1424 = vsel %vm1296, %v1232, %v1360
    %v1425 = vsel %vm1297, %v1233, %v1361
    %v1426 = vsel %vm1298, %v1234, %v1362
    %v1427 = vsel %vm1299, %v1235, %v1363
    %v1428 = vsel %vm1300, %v1236, %v1364
    %v1429 = vsel %vm1301, %v1237, %v1365
    %v1430 = vsel %vm1302, %v1238, %v1366
    %v1431 = vsel %vm1303, %v1239, %v1367
    %v1432 = vsel %vm1304, %v1240, %v1368
    %v1433 = vsel %vm1305, %v1241, %v1369
    %v1434 = vsel %vm1306, %v1242, %v1370
    %v1435 = vsel %vm1307, %v1243, %v1371
    %v1436 = vsel %vm1308, %v1244, %v1372
    %v1437 = vsel %vm1309, %v1245, %v1373
    %v1438 = vsel %vm1310, %v1246, %v1374
    %v1439 = vsel %vm1311, %v1247, %v1375
    %v1440 = vsel %vm1312, %v1248, %v1376
    %v1441 = vsel %vm1313, %v1249, %v1377
    %v1442 = vsel %vm1314, %v1250, %v1378
    %v1443 = vsel %vm1315, %v1251, %v1379
    %v1444 = vsel %vm1316, %v1252, %v1380
    %v1445 = vsel %vm1317, %v1253, %v1381
    %v1446 = vsel %vm1318, %v1254, %v1382
    %v1447 = vsel %vm1319, %v1255, %v1383
    %v1448 = vsel %vm1320, %v1256, %v1384
    %v1449 = vsel %vm1321, %v1257, %v1385
    %v1450 = vsel %vm1322, %v1258, %v1386
    %v1451 = vsel %vm1323, %v1259, %v1387
    %v1452 = vsel %vm1324, %v1260, %v1388
    %v1453 = vsel %vm1325, %v1261, %v1389
    %v1454 = vsel %vm1326, %v1262, %v1390
    %v1455 = vsel %vm1327, %v1263, %v1391
    %v1456 = vsel %vm1328, %v1264, %v1392
    %v1457 = vsel %vm1329, %v1265, %v1393
    %v1458 = vsel %vm1330, %v1266, %v1394
    %v1459 = vsel %vm1331, %v1267, %v1395
    %v1460 = vsel %vm1332, %v1268, %v1396
    %v1461 = vsel %vm1333, %v1269, %v1397
    %v1462 = vsel %vm1334, %v1270, %v1398
    %v1463 = vsel %vm1335, %v1271, %v1399
    %v1464 = vsel %vm1336, %v1272, %v1400
    %v1465 = vsel %vm1337, %v1273, %v1401
    %v1466 = vsel %vm1338, %v1274, %v1402
    %v1467 = vsel %vm1339, %v1275, %v1403
    %v1468 = vsel %vm1340, %v1276, %v1404
    %v1469 = vsel %vm1341, %v1277, %v1405
    %v1470 = vsel %vm1342, %v1278, %v1406
    %v1471 = vsel %vm1343, %v1279, %v1407
    %v1472 = vsel %vm1344, %v1280, %v1408
    %v1473 = vsel %vm1345, %v1281, %v1409
    %v1474 = vsel %vm1346, %v1282, %v1410
    %v1475 = vld [vmem:[#allocation7] sm:$0xff]
    %v1476 = vld [vmem:[#allocation7 + $0x8] sm:$0xff]
    %v1477 = vld [vmem:[#allocation7 + $0x10] sm:$0xff]
    %v1478 = vld [vmem:[#allocation7 + $0x18] sm:$0xff]
    %v1479 = vld [vmem:[#allocation7 + $0x20] sm:$0xff]
    %v1480 = vld [vmem:[#allocation7 + $0x28] sm:$0xff]
    %v1481 = vld [vmem:[#allocation7 + $0x30] sm:$0xff]
    %v1482 = vld [vmem:[#allocation7 + $0x38] sm:$0xff]
    %v1483 = vld [vmem:[#allocation7 + $0x40] sm:$0xff]
    %v1484 = vld [vmem:[#allocation7 + $0x48] sm:$0xff]
    %v1485 = vld [vmem:[#allocation7 + $0x50] sm:$0xff]
    %v1486 = vld [vmem:[#allocation7 + $0x58] sm:$0xff]
    %v1487 = vld [vmem:[#allocation7 + $0x60] sm:$0xff]
    %v1488 = vld [vmem:[#allocation7 + $0x68] sm:$0xff]
    %v1489 = vld [vmem:[#allocation7 + $0x70] sm:$0xff]
    %v1490 = vld [vmem:[#allocation7 + $0x78] sm:$0xff]
    %v1491 = vld [vmem:[#allocation7 + $0x80] sm:$0xff]
    %v1492 = vld [vmem:[#allocation7 + $0x88] sm:$0xff]
    %v1493 = vld [vmem:[#allocation7 + $0x90] sm:$0xff]
    %v1494 = vld [vmem:[#allocation7 + $0x98] sm:$0xff]
    %v1495 = vld [vmem:[#allocation7 + $0xa0] sm:$0xff]
    %v1496 = vld [vmem:[#allocation7 + $0xa8] sm:$0xff]
    %v1497 = vld [vmem:[#allocation7 + $0xb0] sm:$0xff]
    %v1498 = vld [vmem:[#allocation7 + $0xb8] sm:$0xff]
    %v1499 = vld [vmem:[#allocation7 + $0xc0] sm:$0xff]
    %v1500 = vld [vmem:[#allocation7 + $0xc8] sm:$0xff]
    %v1501 = vld [vmem:[#allocation7 + $0xd0] sm:$0xff]
    %v1502 = vld [vmem:[#allocation7 + $0xd8] sm:$0xff]
    %v1503 = vld [vmem:[#allocation7 + $0xe0] sm:$0xff]
    %v1504 = vld [vmem:[#allocation7 + $0xe8] sm:$0xff]
    %v1505 = vld [vmem:[#allocation7 + $0xf0] sm:$0xff]
    %v1506 = vld [vmem:[#allocation7 + $0xf8] sm:$0xff]
    %v1507 = vld [vmem:[#allocation7 + $0x100] sm:$0xff]
    %v1508 = vld [vmem:[#allocation7 + $0x108] sm:$0xff]
    %v1509 = vld [vmem:[#allocation7 + $0x110] sm:$0xff]
    %v1510 = vld [vmem:[#allocation7 + $0x118] sm:$0xff]
    %v1511 = vld [vmem:[#allocation7 + $0x120] sm:$0xff]
    %v1512 = vld [vmem:[#allocation7 + $0x128] sm:$0xff]
    %v1513 = vld [vmem:[#allocation7 + $0x130] sm:$0xff]
    %v1514 = vld [vmem:[#allocation7 + $0x138] sm:$0xff]
    %v1515 = vld [vmem:[#allocation7 + $0x140] sm:$0xff]
    %v1516 = vld [vmem:[#allocation7 + $0x148] sm:$0xff]
    %v1517 = vld [vmem:[#allocation7 + $0x150] sm:$0xff]
    %v1518 = vld [vmem:[#allocation7 + $0x158] sm:$0xff]
    %v1519 = vld [vmem:[#allocation7 + $0x160] sm:$0xff]
    %v1520 = vld [vmem:[#allocation7 + $0x168] sm:$0xff]
    %v1521 = vld [vmem:[#allocation7 + $0x170] sm:$0xff]
    %v1522 = vld [vmem:[#allocation7 + $0x178] sm:$0xff]
    %v1523 = vld [vmem:[#allocation7 + $0x180] sm:$0xff]
    %v1524 = vld [vmem:[#allocation7 + $0x188] sm:$0xff]
    %v1525 = vld [vmem:[#allocation7 + $0x190] sm:$0xff]
    %v1526 = vld [vmem:[#allocation7 + $0x198] sm:$0xff]
    %v1527 = vld [vmem:[#allocation7 + $0x1a0] sm:$0xff]
    %v1528 = vld [vmem:[#allocation7 + $0x1a8] sm:$0xff]
    %v1529 = vld [vmem:[#allocation7 + $0x1b0] sm:$0xff]
    %v1530 = vld [vmem:[#allocation7 + $0x1b8] sm:$0xff]
    %v1531 = vld [vmem:[#allocation7 + $0x1c0] sm:$0xff]
    %v1532 = vld [vmem:[#allocation7 + $0x1c8] sm:$0xff]
    %v1533 = vld [vmem:[#allocation7 + $0x1d0] sm:$0xff]
    %v1534 = vld [vmem:[#allocation7 + $0x1d8] sm:$0xff]
    %v1535 = vld [vmem:[#allocation7 + $0x1e0] sm:$0xff]
    %v1536 = vld [vmem:[#allocation7 + $0x1e8] sm:$0xff]
    %v1537 = vld [vmem:[#allocation7 + $0x1f0] sm:$0xff]
    %v1538 = vld [vmem:[#allocation7 + $0x1f8] sm:$0xff]
    %v1539 = vld [vmem:[%s9] sm:$0x3]
    %v1541 = vlaneseq
    %v1542 = vshrl.u32 %v1541, 7
    %v1543 = vsub.s32 0, %v1542
    %v1544 = vrot.slane %v1539, %v1543
    %v1545 = vlaneseq
    %v1546 = vshrl.u32 %v1545, 7
    %v1547 = vsub.s32 1, %v1546
    %v1548 = vrot.slane %v1539, %v1547
    %1551 = vmatprep.subr.mxu0 %v1506
    %1552 = vmatpush1.msra.mxu0 %v1505
    %1553 = vmatprep.subr.mxu0 %v1504
    %1554 = vmatpush1.msra.mxu0 %v1503
    %1555 = vmatprep.subr.mxu0 %v1502
    %1556 = vmatpush1.msra.mxu0 %v1501
    %1557 = vmatprep.subr.mxu0 %v1500
    %1558 = vmatpush1.msra.mxu0 %v1499
    %1559 = vmatprep.subr.mxu0 %v1498
    %1560 = vmatpush1.msra.mxu0 %v1497
    %1561 = vmatprep.subr.mxu0 %v1496
    %1562 = vmatpush1.msra.mxu0 %v1495
    %1563 = vmatprep.subr.mxu0 %v1494
    %1564 = vmatpush1.msra.mxu0 %v1493
    %1565 = vmatprep.subr.mxu0 %v1492
    %1566 = vmatpush1.msra.mxu0 %v1491
    %1567 = vmatprep.subr.mxu0 %v1490
    %1568 = vmatpush1.msra.mxu0 %v1489
    %1569 = vmatprep.subr.mxu0 %v1488
    %1570 = vmatpush1.msra.mxu0 %v1487
    %1571 = vmatprep.subr.mxu0 %v1486
    %1572 = vmatpush1.msra.mxu0 %v1485
    %1573 = vmatprep.subr.mxu0 %v1484
    %1574 = vmatpush1.msra.mxu0 %v1483
    %1575 = vmatprep.subr.mxu0 %v1482
    %1576 = vmatpush1.msra.mxu0 %v1481
    %1577 = vmatprep.subr.mxu0 %v1480
    %1578 = vmatpush1.msra.mxu0 %v1479
    %1579 = vmatprep.subr.mxu0 %v1478
    %1580 = vmatpush1.msra.mxu0 %v1477
    %1581 = vmatprep.subr.mxu0 %v1476
    %1582 = vmatpush1.msra.mxu0 %v1475
    %1583 = vmatprep.subr.mxu0 %v1538
    %1584 = vmatpush2.msra.mxu0 %v1537
    %1585 = vmatprep.subr.mxu0 %v1536
    %1586 = vmatpush2.msra.mxu0 %v1535
    %1587 = vmatprep.subr.mxu0 %v1534
    %1588 = vmatpush2.msra.mxu0 %v1533
    %1589 = vmatprep.subr.mxu0 %v1532
    %1590 = vmatpush2.msra.mxu0 %v1531
    %1591 = vmatprep.subr.mxu0 %v1530
    %1592 = vmatpush2.msra.mxu0 %v1529
    %1593 = vmatprep.subr.mxu0 %v1528
    %1594 = vmatpush2.msra.mxu0 %v1527
    %1595 = vmatprep.subr.mxu0 %v1526
    %1596 = vmatpush2.msra.mxu0 %v1525
    %1597 = vmatprep.subr.mxu0 %v1524
    %1598 = vmatpush2.msra.mxu0 %v1523
    %1599 = vmatprep.subr.mxu0 %v1522
    %1600 = vmatpush2.msra.mxu0 %v1521
    %1601 = vmatprep.subr.mxu0 %v1520
    %1602 = vmatpush2.msra.mxu0 %v1519
    %1603 = vmatprep.subr.mxu0 %v1518
    %1604 = vmatpush2.msra.mxu0 %v1517
    %1605 = vmatprep.subr.mxu0 %v1516
    %1606 = vmatpush2.msra.mxu0 %v1515
    %1607 = vmatprep.subr.mxu0 %v1514
    %1608 = vmatpush2.msra.mxu0 %v1513
    %1609 = vmatprep.subr.mxu0 %v1512
    %1610 = vmatpush2.msra.mxu0 %v1511
    %1611 = vmatprep.subr.mxu0 %v1510
    %1612 = vmatpush2.msra.mxu0 %v1509
    %1613 = vmatprep.subr.mxu0 %v1508
    %1614 = vmatpush2.msra.mxu0 %v1507
    %1615 = vmatprep.mubr.f32.mxu0 %v1412
    %1616 = vmatmul.mubr.f32.gmra.mxu0 %v1411
    %v1617 = vpop.f32.mrf.mxu0
    %v1618 = vadd.f32 %v1544, %v1617
    %v1619 = vpop.f32.mrf.mxu0
    %v1620 = vadd.f32 %v1548, %v1619
    %1621 = vmatprep.mubr.f32.mxu0 %v1414
    %1622 = vmatmul.mubr.f32.gmra.mxu0 %v1413
    %v1623 = vpop.f32.mrf.mxu0
    %v1624 = vadd.f32 %v1544, %v1623
    %v1625 = vpop.f32.mrf.mxu0
    %v1626 = vadd.f32 %v1548, %v1625
    %1627 = vmatprep.mubr.f32.mxu0 %v1416
    %1628 = vmatmul.mubr.f32.gmra.mxu0 %v1415
    %v1629 = vpop.f32.mrf.mxu0
    %v1630 = vadd.f32 %v1544, %v1629
    %v1631 = vpop.f32.mrf.mxu0
    %v1632 = vadd.f32 %v1548, %v1631
    %1633 = vmatprep.mubr.f32.mxu0 %v1418
    %1634 = vmatmul.mubr.f32.gmra.mxu0 %v1417
    %v1635 = vpop.f32.mrf.mxu0
    %v1636 = vadd.f32 %v1544, %v1635
    %v1637 = vpop.f32.mrf.mxu0
    %v1638 = vadd.f32 %v1548, %v1637
    %1639 = vmatprep.mubr.f32.mxu0 %v1420
    %1640 = vmatmul.mubr.f32.gmra.mxu0 %v1419
    %v1641 = vpop.f32.mrf.mxu0
    %v1642 = vadd.f32 %v1544, %v1641
    %v1643 = vpop.f32.mrf.mxu0
    %v1644 = vadd.f32 %v1548, %v1643
    %1645 = vmatprep.mubr.f32.mxu0 %v1422
    %1646 = vmatmul.mubr.f32.gmra.mxu0 %v1421
    %v1647 = vpop.f32.mrf.mxu0
    %v1648 = vadd.f32 %v1544, %v1647
    %v1649 = vpop.f32.mrf.mxu0
    %v1650 = vadd.f32 %v1548, %v1649
    %1651 = vmatprep.mubr.f32.mxu0 %v1424
    %1652 = vmatmul.mubr.f32.gmra.mxu0 %v1423
    %v1653 = vpop.f32.mrf.mxu0
    %v1654 = vadd.f32 %v1544, %v1653
    %v1655 = vpop.f32.mrf.mxu0
    %v1656 = vadd.f32 %v1548, %v1655
    %1657 = vmatprep.mubr.f32.mxu0 %v1426
    %1658 = vmatmul.mubr.f32.gmra.mxu0 %v1425
    %v1659 = vpop.f32.mrf.mxu0
    %v1660 = vadd.f32 %v1544, %v1659
    %v1661 = vpop.f32.mrf.mxu0
    %v1662 = vadd.f32 %v1548, %v1661
    %1663 = vmatprep.mubr.f32.mxu0 %v1428
    %1664 = vmatmul.mubr.f32.gmra.mxu0 %v1427
    %v1665 = vpop.f32.mrf.mxu0
    %v1666 = vadd.f32 %v1544, %v1665
    %v1667 = vpop.f32.mrf.mxu0
    %v1668 = vadd.f32 %v1548, %v1667
    %1669 = vmatprep.mubr.f32.mxu0 %v1430
    %1670 = vmatmul.mubr.f32.gmra.mxu0 %v1429
    %v1671 = vpop.f32.mrf.mxu0
    %v1672 = vadd.f32 %v1544, %v1671
    %v1673 = vpop.f32.mrf.mxu0
    %v1674 = vadd.f32 %v1548, %v1673
    %1675 = vmatprep.mubr.f32.mxu0 %v1432
    %1676 = vmatmul.mubr.f32.gmra.mxu0 %v1431
    %v1677 = vpop.f32.mrf.mxu0
    %v1678 = vadd.f32 %v1544, %v1677
    %v1679 = vpop.f32.mrf.mxu0
    %v1680 = vadd.f32 %v1548, %v1679
    %1681 = vmatprep.mubr.f32.mxu0 %v1434
    %1682 = vmatmul.mubr.f32.gmra.mxu0 %v1433
    %v1683 = vpop.f32.mrf.mxu0
    %v1684 = vadd.f32 %v1544, %v1683
    %v1685 = vpop.f32.mrf.mxu0
    %v1686 = vadd.f32 %v1548, %v1685
    %1687 = vmatprep.mubr.f32.mxu0 %v1436
    %1688 = vmatmul.mubr.f32.gmra.mxu0 %v1435
    %v1689 = vpop.f32.mrf.mxu0
    %v1690 = vadd.f32 %v1544, %v1689
    %v1691 = vpop.f32.mrf.mxu0
    %v1692 = vadd.f32 %v1548, %v1691
    %1693 = vmatprep.mubr.f32.mxu0 %v1438
    %1694 = vmatmul.mubr.f32.gmra.mxu0 %v1437
    %v1695 = vpop.f32.mrf.mxu0
    %v1696 = vadd.f32 %v1544, %v1695
    %v1697 = vpop.f32.mrf.mxu0
    %v1698 = vadd.f32 %v1548, %v1697
    %1699 = vmatprep.mubr.f32.mxu0 %v1440
    %1700 = vmatmul.mubr.f32.gmra.mxu0 %v1439
    %v1701 = vpop.f32.mrf.mxu0
    %v1702 = vadd.f32 %v1544, %v1701
    %v1703 = vpop.f32.mrf.mxu0
    %v1704 = vadd.f32 %v1548, %v1703
    %1705 = vmatprep.mubr.f32.mxu0 %v1442
    %1706 = vmatmul.mubr.f32.gmra.mxu0 %v1441
    %v1707 = vpop.f32.mrf.mxu0
    %v1708 = vadd.f32 %v1544, %v1707
    %v1709 = vpop.f32.mrf.mxu0
    %v1710 = vadd.f32 %v1548, %v1709
    %1711 = vmatprep.mubr.f32.mxu0 %v1444
    %1712 = vmatmul.mubr.f32.gmra.mxu0 %v1443
    %v1713 = vpop.f32.mrf.mxu0
    %v1714 = vadd.f32 %v1544, %v1713
    %v1715 = vpop.f32.mrf.mxu0
    %v1716 = vadd.f32 %v1548, %v1715
    %1717 = vmatprep.mubr.f32.mxu0 %v1446
    %1718 = vmatmul.mubr.f32.gmra.mxu0 %v1445
    %v1719 = vpop.f32.mrf.mxu0
    %v1720 = vadd.f32 %v1544, %v1719
    %v1721 = vpop.f32.mrf.mxu0
    %v1722 = vadd.f32 %v1548, %v1721
    %1723 = vmatprep.mubr.f32.mxu0 %v1448
    %1724 = vmatmul.mubr.f32.gmra.mxu0 %v1447
    %v1725 = vpop.f32.mrf.mxu0
    %v1726 = vadd.f32 %v1544, %v1725
    %v1727 = vpop.f32.mrf.mxu0
    %v1728 = vadd.f32 %v1548, %v1727
    %1729 = vmatprep.mubr.f32.mxu0 %v1450
    %1730 = vmatmul.mubr.f32.gmra.mxu0 %v1449
    %v1731 = vpop.f32.mrf.mxu0
    %v1732 = vadd.f32 %v1544, %v1731
    %v1733 = vpop.f32.mrf.mxu0
    %v1734 = vadd.f32 %v1548, %v1733
    %1735 = vmatprep.mubr.f32.mxu0 %v1452
    %1736 = vmatmul.mubr.f32.gmra.mxu0 %v1451
    %v1737 = vpop.f32.mrf.mxu0
    %v1738 = vadd.f32 %v1544, %v1737
    %v1739 = vpop.f32.mrf.mxu0
    %v1740 = vadd.f32 %v1548, %v1739
    %1741 = vmatprep.mubr.f32.mxu0 %v1454
    %1742 = vmatmul.mubr.f32.gmra.mxu0 %v1453
    %v1743 = vpop.f32.mrf.mxu0
    %v1744 = vadd.f32 %v1544, %v1743
    %v1745 = vpop.f32.mrf.mxu0
    %v1746 = vadd.f32 %v1548, %v1745
    %1747 = vmatprep.mubr.f32.mxu0 %v1456
    %1748 = vmatmul.mubr.f32.gmra.mxu0 %v1455
    %v1749 = vpop.f32.mrf.mxu0
    %v1750 = vadd.f32 %v1544, %v1749
    %v1751 = vpop.f32.mrf.mxu0
    %v1752 = vadd.f32 %v1548, %v1751
    %1753 = vmatprep.mubr.f32.mxu0 %v1458
    %1754 = vmatmul.mubr.f32.gmra.mxu0 %v1457
    %v1755 = vpop.f32.mrf.mxu0
    %v1756 = vadd.f32 %v1544, %v1755
    %v1757 = vpop.f32.mrf.mxu0
    %v1758 = vadd.f32 %v1548, %v1757
    %1759 = vmatprep.mubr.f32.mxu0 %v1460
    %1760 = vmatmul.mubr.f32.gmra.mxu0 %v1459
    %v1761 = vpop.f32.mrf.mxu0
    %v1762 = vadd.f32 %v1544, %v1761
    %v1763 = vpop.f32.mrf.mxu0
    %v1764 = vadd.f32 %v1548, %v1763
    %1765 = vmatprep.mubr.f32.mxu0 %v1462
    %1766 = vmatmul.mubr.f32.gmra.mxu0 %v1461
    %v1767 = vpop.f32.mrf.mxu0
    %v1768 = vadd.f32 %v1544, %v1767
    %v1769 = vpop.f32.mrf.mxu0
    %v1770 = vadd.f32 %v1548, %v1769
    %1771 = vmatprep.mubr.f32.mxu0 %v1464
    %1772 = vmatmul.mubr.f32.gmra.mxu0 %v1463
    %v1773 = vpop.f32.mrf.mxu0
    %v1774 = vadd.f32 %v1544, %v1773
    %v1775 = vpop.f32.mrf.mxu0
    %v1776 = vadd.f32 %v1548, %v1775
    %1777 = vmatprep.mubr.f32.mxu0 %v1466
    %1778 = vmatmul.mubr.f32.gmra.mxu0 %v1465
    %v1779 = vpop.f32.mrf.mxu0
    %v1780 = vadd.f32 %v1544, %v1779
    %v1781 = vpop.f32.mrf.mxu0
    %v1782 = vadd.f32 %v1548, %v1781
    %1783 = vmatprep.mubr.f32.mxu0 %v1468
    %1784 = vmatmul.mubr.f32.gmra.mxu0 %v1467
    %v1785 = vpop.f32.mrf.mxu0
    %v1786 = vadd.f32 %v1544, %v1785
    %v1787 = vpop.f32.mrf.mxu0
    %v1788 = vadd.f32 %v1548, %v1787
    %1789 = vmatprep.mubr.f32.mxu0 %v1470
    %1790 = vmatmul.mubr.f32.gmra.mxu0 %v1469
    %v1791 = vpop.f32.mrf.mxu0
    %v1792 = vadd.f32 %v1544, %v1791
    %v1793 = vpop.f32.mrf.mxu0
    %v1794 = vadd.f32 %v1548, %v1793
    %1795 = vmatprep.mubr.f32.mxu0 %v1472
    %1796 = vmatmul.mubr.f32.gmra.mxu0 %v1471
    %v1797 = vpop.f32.mrf.mxu0
    %v1798 = vadd.f32 %v1544, %v1797
    %v1799 = vpop.f32.mrf.mxu0
    %v1800 = vadd.f32 %v1548, %v1799
    %1801 = vmatprep.mubr.f32.mxu0 %v1474
    %1802 = vmatmul.mubr.f32.gmra.mxu0 %v1473
    %v1803 = vpop.f32.mrf.mxu0
    %v1804 = vadd.f32 %v1544, %v1803
    %v1805 = vpop.f32.mrf.mxu0
    %v1806 = vadd.f32 %v1548, %v1805
    %1807 = vdwg.mxu0
    %v1808 = vld [vmem:[#allocation4] sm:$0xff]
    %v1809 = vld [vmem:[#allocation4 + $0x8] sm:$0xff]
    %v1810 = vld [vmem:[#allocation4 + $0x10] sm:$0xff]
    %v1811 = vld [vmem:[#allocation4 + $0x18] sm:$0xff]
    %v1812 = vld [vmem:[#allocation4 + $0x20] sm:$0xff]
    %v1813 = vld [vmem:[#allocation4 + $0x28] sm:$0xff]
    %v1814 = vld [vmem:[#allocation4 + $0x30] sm:$0xff]
    %v1815 = vld [vmem:[#allocation4 + $0x38] sm:$0xff]
    %v1816 = vld [vmem:[#allocation4 + $0x40] sm:$0xff]
    %v1817 = vld [vmem:[#allocation4 + $0x48] sm:$0xff]
    %v1818 = vld [vmem:[#allocation4 + $0x50] sm:$0xff]
    %v1819 = vld [vmem:[#allocation4 + $0x58] sm:$0xff]
    %v1820 = vld [vmem:[#allocation4 + $0x60] sm:$0xff]
    %v1821 = vld [vmem:[#allocation4 + $0x68] sm:$0xff]
    %v1822 = vld [vmem:[#allocation4 + $0x70] sm:$0xff]
    %v1823 = vld [vmem:[#allocation4 + $0x78] sm:$0xff]
    %v1824 = vld [vmem:[#allocation4 + $0x80] sm:$0xff]
    %v1825 = vld [vmem:[#allocation4 + $0x88] sm:$0xff]
    %v1826 = vld [vmem:[#allocation4 + $0x90] sm:$0xff]
    %v1827 = vld [vmem:[#allocation4 + $0x98] sm:$0xff]
    %v1828 = vld [vmem:[#allocation4 + $0xa0] sm:$0xff]
    %v1829 = vld [vmem:[#allocation4 + $0xa8] sm:$0xff]
    %v1830 = vld [vmem:[#allocation4 + $0xb0] sm:$0xff]
    %v1831 = vld [vmem:[#allocation4 + $0xb8] sm:$0xff]
    %v1832 = vld [vmem:[#allocation4 + $0xc0] sm:$0xff]
    %v1833 = vld [vmem:[#allocation4 + $0xc8] sm:$0xff]
    %v1834 = vld [vmem:[#allocation4 + $0xd0] sm:$0xff]
    %v1835 = vld [vmem:[#allocation4 + $0xd8] sm:$0xff]
    %v1836 = vld [vmem:[#allocation4 + $0xe0] sm:$0xff]
    %v1837 = vld [vmem:[#allocation4 + $0xe8] sm:$0xff]
    %v1838 = vld [vmem:[#allocation4 + $0xf0] sm:$0xff]
    %v1839 = vld [vmem:[#allocation4 + $0xf8] sm:$0xff]
    %v1840 = vld [vmem:[#allocation4 + $0x100] sm:$0xff]
    %v1841 = vld [vmem:[#allocation4 + $0x108] sm:$0xff]
    %v1842 = vld [vmem:[#allocation4 + $0x110] sm:$0xff]
    %v1843 = vld [vmem:[#allocation4 + $0x118] sm:$0xff]
    %v1844 = vld [vmem:[#allocation4 + $0x120] sm:$0xff]
    %v1845 = vld [vmem:[#allocation4 + $0x128] sm:$0xff]
    %v1846 = vld [vmem:[#allocation4 + $0x130] sm:$0xff]
    %v1847 = vld [vmem:[#allocation4 + $0x138] sm:$0xff]
    %v1848 = vld [vmem:[#allocation4 + $0x140] sm:$0xff]
    %v1849 = vld [vmem:[#allocation4 + $0x148] sm:$0xff]
    %v1850 = vld [vmem:[#allocation4 + $0x150] sm:$0xff]
    %v1851 = vld [vmem:[#allocation4 + $0x158] sm:$0xff]
    %v1852 = vld [vmem:[#allocation4 + $0x160] sm:$0xff]
    %v1853 = vld [vmem:[#allocation4 + $0x168] sm:$0xff]
    %v1854 = vld [vmem:[#allocation4 + $0x170] sm:$0xff]
    %v1855 = vld [vmem:[#allocation4 + $0x178] sm:$0xff]
    %v1856 = vld [vmem:[#allocation4 + $0x180] sm:$0xff]
    %v1857 = vld [vmem:[#allocation4 + $0x188] sm:$0xff]
    %v1858 = vld [vmem:[#allocation4 + $0x190] sm:$0xff]
    %v1859 = vld [vmem:[#allocation4 + $0x198] sm:$0xff]
    %v1860 = vld [vmem:[#allocation4 + $0x1a0] sm:$0xff]
    %v1861 = vld [vmem:[#allocation4 + $0x1a8] sm:$0xff]
    %v1862 = vld [vmem:[#allocation4 + $0x1b0] sm:$0xff]
    %v1863 = vld [vmem:[#allocation4 + $0x1b8] sm:$0xff]
    %v1864 = vld [vmem:[#allocation4 + $0x1c0] sm:$0xff]
    %v1865 = vld [vmem:[#allocation4 + $0x1c8] sm:$0xff]
    %v1866 = vld [vmem:[#allocation4 + $0x1d0] sm:$0xff]
    %v1867 = vld [vmem:[#allocation4 + $0x1d8] sm:$0xff]
    %v1868 = vld [vmem:[#allocation4 + $0x1e0] sm:$0xff]
    %v1869 = vld [vmem:[#allocation4 + $0x1e8] sm:$0xff]
    %v1870 = vld [vmem:[#allocation4 + $0x1f0] sm:$0xff]
    %v1871 = vld [vmem:[#allocation4 + $0x1f8] sm:$0xff]
    %v1872 = vadd.f32 %v1618, %v1808
    %v1873 = vadd.f32 %v1620, %v1809
    %v1874 = vadd.f32 %v1624, %v1810
    %v1875 = vadd.f32 %v1626, %v1811
    %v1876 = vadd.f32 %v1630, %v1812
    %v1877 = vadd.f32 %v1632, %v1813
    %v1878 = vadd.f32 %v1636, %v1814
    %v1879 = vadd.f32 %v1638, %v1815
    %v1880 = vadd.f32 %v1642, %v1816
    %v1881 = vadd.f32 %v1644, %v1817
    %v1882 = vadd.f32 %v1648, %v1818
    %v1883 = vadd.f32 %v1650, %v1819
    %v1884 = vadd.f32 %v1654, %v1820
    %v1885 = vadd.f32 %v1656, %v1821
    %v1886 = vadd.f32 %v1660, %v1822
    %v1887 = vadd.f32 %v1662, %v1823
    %v1888 = vadd.f32 %v1666, %v1824
    %v1889 = vadd.f32 %v1668, %v1825
    %v1890 = vadd.f32 %v1672, %v1826
    %v1891 = vadd.f32 %v1674, %v1827
    %v1892 = vadd.f32 %v1678, %v1828
    %v1893 = vadd.f32 %v1680, %v1829
    %v1894 = vadd.f32 %v1684, %v1830
    %v1895 = vadd.f32 %v1686, %v1831
    %v1896 = vadd.f32 %v1690, %v1832
    %v1897 = vadd.f32 %v1692, %v1833
    %v1898 = vadd.f32 %v1696, %v1834
    %v1899 = vadd.f32 %v1698, %v1835
    %v1900 = vadd.f32 %v1702, %v1836
    %v1901 = vadd.f32 %v1704, %v1837
    %v1902 = vadd.f32 %v1708, %v1838
    %v1903 = vadd.f32 %v1710, %v1839
    %v1904 = vadd.f32 %v1714, %v1840
    %v1905 = vadd.f32 %v1716, %v1841
    %v1906 = vadd.f32 %v1720, %v1842
    %v1907 = vadd.f32 %v1722, %v1843
    %v1908 = vadd.f32 %v1726, %v1844
    %v1909 = vadd.f32 %v1728, %v1845
    %v1910 = vadd.f32 %v1732, %v1846
    %v1911 = vadd.f32 %v1734, %v1847
    %v1912 = vadd.f32 %v1738, %v1848
    %v1913 = vadd.f32 %v1740, %v1849
    %v1914 = vadd.f32 %v1744, %v1850
    %v1915 = vadd.f32 %v1746, %v1851
    %v1916 = vadd.f32 %v1750, %v1852
    %v1917 = vadd.f32 %v1752, %v1853
    %v1918 = vadd.f32 %v1756, %v1854
    %v1919 = vadd.f32 %v1758, %v1855
    %v1920 = vadd.f32 %v1762, %v1856
    %v1921 = vadd.f32 %v1764, %v1857
    %v1922 = vadd.f32 %v1768, %v1858
    %v1923 = vadd.f32 %v1770, %v1859
    %v1924 = vadd.f32 %v1774, %v1860
    %v1925 = vadd.f32 %v1776, %v1861
    %v1926 = vadd.f32 %v1780, %v1862
    %v1927 = vadd.f32 %v1782, %v1863
    %v1928 = vadd.f32 %v1786, %v1864
    %v1929 = vadd.f32 %v1788, %v1865
    %v1930 = vadd.f32 %v1792, %v1866
    %v1931 = vadd.f32 %v1794, %v1867
    %v1932 = vadd.f32 %v1798, %v1868
    %v1933 = vadd.f32 %v1800, %v1869
    %v1934 = vadd.f32 %v1804, %v1870
    %v1935 = vadd.f32 %v1806, %v1871
    %vm1936 = vcmp.gt.f32.partialorder %v1872, 0.0
    %vm1937 = vcmp.gt.f32.partialorder %v1873, 0.0
    %vm1938 = vcmp.gt.f32.partialorder %v1874, 0.0
    %vm1939 = vcmp.gt.f32.partialorder %v1875, 0.0
    %vm1940 = vcmp.gt.f32.partialorder %v1876, 0.0
    %vm1941 = vcmp.gt.f32.partialorder %v1877, 0.0
    %vm1942 = vcmp.gt.f32.partialorder %v1878, 0.0
    %vm1943 = vcmp.gt.f32.partialorder %v1879, 0.0
    %vm1944 = vcmp.gt.f32.partialorder %v1880, 0.0
    %vm1945 = vcmp.gt.f32.partialorder %v1881, 0.0
    %vm1946 = vcmp.gt.f32.partialorder %v1882, 0.0
    %vm1947 = vcmp.gt.f32.partialorder %v1883, 0.0
    %vm1948 = vcmp.gt.f32.partialorder %v1884, 0.0
    %vm1949 = vcmp.gt.f32.partialorder %v1885, 0.0
    %vm1950 = vcmp.gt.f32.partialorder %v1886, 0.0
    %vm1951 = vcmp.gt.f32.partialorder %v1887, 0.0
    %vm1952 = vcmp.gt.f32.partialorder %v1888, 0.0
    %vm1953 = vcmp.gt.f32.partialorder %v1889, 0.0
    %vm1954 = vcmp.gt.f32.partialorder %v1890, 0.0
    %vm1955 = vcmp.gt.f32.partialorder %v1891, 0.0
    %vm1956 = vcmp.gt.f32.partialorder %v1892, 0.0
    %vm1957 = vcmp.gt.f32.partialorder %v1893, 0.0
    %vm1958 = vcmp.gt.f32.partialorder %v1894, 0.0
    %vm1959 = vcmp.gt.f32.partialorder %v1895, 0.0
    %vm1960 = vcmp.gt.f32.partialorder %v1896, 0.0
    %vm1961 = vcmp.gt.f32.partialorder %v1897, 0.0
    %vm1962 = vcmp.gt.f32.partialorder %v1898, 0.0
    %vm1963 = vcmp.gt.f32.partialorder %v1899, 0.0
    %vm1964 = vcmp.gt.f32.partialorder %v1900, 0.0
    %vm1965 = vcmp.gt.f32.partialorder %v1901, 0.0
    %vm1966 = vcmp.gt.f32.partialorder %v1902, 0.0
    %vm1967 = vcmp.gt.f32.partialorder %v1903, 0.0
    %vm1968 = vcmp.gt.f32.partialorder %v1904, 0.0
    %vm1969 = vcmp.gt.f32.partialorder %v1905, 0.0
    %vm1970 = vcmp.gt.f32.partialorder %v1906, 0.0
    %vm1971 = vcmp.gt.f32.partialorder %v1907, 0.0
    %vm1972 = vcmp.gt.f32.partialorder %v1908, 0.0
    %vm1973 = vcmp.gt.f32.partialorder %v1909, 0.0
    %vm1974 = vcmp.gt.f32.partialorder %v1910, 0.0
    %vm1975 = vcmp.gt.f32.partialorder %v1911, 0.0
    %vm1976 = vcmp.gt.f32.partialorder %v1912, 0.0
    %vm1977 = vcmp.gt.f32.partialorder %v1913, 0.0
    %vm1978 = vcmp.gt.f32.partialorder %v1914, 0.0
    %vm1979 = vcmp.gt.f32.partialorder %v1915, 0.0
    %vm1980 = vcmp.gt.f32.partialorder %v1916, 0.0
    %vm1981 = vcmp.gt.f32.partialorder %v1917, 0.0
    %vm1982 = vcmp.gt.f32.partialorder %v1918, 0.0
    %vm1983 = vcmp.gt.f32.partialorder %v1919, 0.0
    %vm1984 = vcmp.gt.f32.partialorder %v1920, 0.0
    %vm1985 = vcmp.gt.f32.partialorder %v1921, 0.0
    %vm1986 = vcmp.gt.f32.partialorder %v1922, 0.0
    %vm1987 = vcmp.gt.f32.partialorder %v1923, 0.0
    %vm1988 = vcmp.gt.f32.partialorder %v1924, 0.0
    %vm1989 = vcmp.gt.f32.partialorder %v1925, 0.0
    %vm1990 = vcmp.gt.f32.partialorder %v1926, 0.0
    %vm1991 = vcmp.gt.f32.partialorder %v1927, 0.0
    %vm1992 = vcmp.gt.f32.partialorder %v1928, 0.0
    %vm1993 = vcmp.gt.f32.partialorder %v1929, 0.0
    %vm1994 = vcmp.gt.f32.partialorder %v1930, 0.0
    %vm1995 = vcmp.gt.f32.partialorder %v1931, 0.0
    %vm1996 = vcmp.gt.f32.partialorder %v1932, 0.0
    %vm1997 = vcmp.gt.f32.partialorder %v1933, 0.0
    %vm1998 = vcmp.gt.f32.partialorder %v1934, 0.0
    %vm1999 = vcmp.gt.f32.partialorder %v1935, 0.0
    %v2000 = vmul.f32 %v1872, 0.2
    %v2001 = vmul.f32 %v1873, 0.2
    %v2002 = vmul.f32 %v1874, 0.2
    %v2003 = vmul.f32 %v1875, 0.2
    %v2004 = vmul.f32 %v1876, 0.2
    %v2005 = vmul.f32 %v1877, 0.2
    %v2006 = vmul.f32 %v1878, 0.2
    %v2007 = vmul.f32 %v1879, 0.2
    %v2008 = vmul.f32 %v1880, 0.2
    %v2009 = vmul.f32 %v1881, 0.2
    %v2010 = vmul.f32 %v1882, 0.2
    %v2011 = vmul.f32 %v1883, 0.2
    %v2012 = vmul.f32 %v1884, 0.2
    %v2013 = vmul.f32 %v1885, 0.2
    %v2014 = vmul.f32 %v1886, 0.2
    %v2015 = vmul.f32 %v1887, 0.2
    %v2016 = vmul.f32 %v1888, 0.2
    %v2017 = vmul.f32 %v1889, 0.2
    %v2018 = vmul.f32 %v1890, 0.2
    %v2019 = vmul.f32 %v1891, 0.2
    %v2020 = vmul.f32 %v1892, 0.2
    %v2021 = vmul.f32 %v1893, 0.2
    %v2022 = vmul.f32 %v1894, 0.2
    %v2023 = vmul.f32 %v1895, 0.2
    %v2024 = vmul.f32 %v1896, 0.2
    %v2025 = vmul.f32 %v1897, 0.2
    %v2026 = vmul.f32 %v1898, 0.2
    %v2027 = vmul.f32 %v1899, 0.2
    %v2028 = vmul.f32 %v1900, 0.2
    %v2029 = vmul.f32 %v1901, 0.2
    %v2030 = vmul.f32 %v1902, 0.2
    %v2031 = vmul.f32 %v1903, 0.2
    %v2032 = vmul.f32 %v1904, 0.2
    %v2033 = vmul.f32 %v1905, 0.2
    %v2034 = vmul.f32 %v1906, 0.2
    %v2035 = vmul.f32 %v1907, 0.2
    %v2036 = vmul.f32 %v1908, 0.2
    %v2037 = vmul.f32 %v1909, 0.2
    %v2038 = vmul.f32 %v1910, 0.2
    %v2039 = vmul.f32 %v1911, 0.2
    %v2040 = vmul.f32 %v1912, 0.2
    %v2041 = vmul.f32 %v1913, 0.2
    %v2042 = vmul.f32 %v1914, 0.2
    %v2043 = vmul.f32 %v1915, 0.2
    %v2044 = vmul.f32 %v1916, 0.2
    %v2045 = vmul.f32 %v1917, 0.2
    %v2046 = vmul.f32 %v1918, 0.2
    %v2047 = vmul.f32 %v1919, 0.2
    %v2048 = vmul.f32 %v1920, 0.2
    %v2049 = vmul.f32 %v1921, 0.2
    %v2050 = vmul.f32 %v1922, 0.2
    %v2051 = vmul.f32 %v1923, 0.2
    %v2052 = vmul.f32 %v1924, 0.2
    %v2053 = vmul.f32 %v1925, 0.2
    %v2054 = vmul.f32 %v1926, 0.2
    %v2055 = vmul.f32 %v1927, 0.2
    %v2056 = vmul.f32 %v1928, 0.2
    %v2057 = vmul.f32 %v1929, 0.2
    %v2058 = vmul.f32 %v1930, 0.2
    %v2059 = vmul.f32 %v1931, 0.2
    %v2060 = vmul.f32 %v1932, 0.2
    %v2061 = vmul.f32 %v1933, 0.2
    %v2062 = vmul.f32 %v1934, 0.2
    %v2063 = vmul.f32 %v1935, 0.2
    %v2064 = vsel %vm1936, %v1872, %v2000
    %v2065 = vsel %vm1937, %v1873, %v2001
    %v2066 = vsel %vm1938, %v1874, %v2002
    %v2067 = vsel %vm1939, %v1875, %v2003
    %v2068 = vsel %vm1940, %v1876, %v2004
    %v2069 = vsel %vm1941, %v1877, %v2005
    %v2070 = vsel %vm1942, %v1878, %v2006
    %v2071 = vsel %vm1943, %v1879, %v2007
    %v2072 = vsel %vm1944, %v1880, %v2008
    %v2073 = vsel %vm1945, %v1881, %v2009
    %v2074 = vsel %vm1946, %v1882, %v2010
    %v2075 = vsel %vm1947, %v1883, %v2011
    %v2076 = vsel %vm1948, %v1884, %v2012
    %v2077 = vsel %vm1949, %v1885, %v2013
    %v2078 = vsel %vm1950, %v1886, %v2014
    %v2079 = vsel %vm1951, %v1887, %v2015
    %v2080 = vsel %vm1952, %v1888, %v2016
    %v2081 = vsel %vm1953, %v1889, %v2017
    %v2082 = vsel %vm1954, %v1890, %v2018
    %v2083 = vsel %vm1955, %v1891, %v2019
    %v2084 = vsel %vm1956, %v1892, %v2020
    %v2085 = vsel %vm1957, %v1893, %v2021
    %v2086 = vsel %vm1958, %v1894, %v2022
    %v2087 = vsel %vm1959, %v1895, %v2023
    %v2088 = vsel %vm1960, %v1896, %v2024
    %v2089 = vsel %vm1961, %v1897, %v2025
    %v2090 = vsel %vm1962, %v1898, %v2026
    %v2091 = vsel %vm1963, %v1899, %v2027
    %v2092 = vsel %vm1964, %v1900, %v2028
    %v2093 = vsel %vm1965, %v1901, %v2029
    %v2094 = vsel %vm1966, %v1902, %v2030
    %v2095 = vsel %vm1967, %v1903, %v2031
    %v2096 = vsel %vm1968, %v1904, %v2032
    %v2097 = vsel %vm1969, %v1905, %v2033
    %v2098 = vsel %vm1970, %v1906, %v2034
    %v2099 = vsel %vm1971, %v1907, %v2035
    %v2100 = vsel %vm1972, %v1908, %v2036
    %v2101 = vsel %vm1973, %v1909, %v2037
    %v2102 = vsel %vm1974, %v1910, %v2038
    %v2103 = vsel %vm1975, %v1911, %v2039
    %v2104 = vsel %vm1976, %v1912, %v2040
    %v2105 = vsel %vm1977, %v1913, %v2041
    %v2106 = vsel %vm1978, %v1914, %v2042
    %v2107 = vsel %vm1979, %v1915, %v2043
    %v2108 = vsel %vm1980, %v1916, %v2044
    %v2109 = vsel %vm1981, %v1917, %v2045
    %v2110 = vsel %vm1982, %v1918, %v2046
    %v2111 = vsel %vm1983, %v1919, %v2047
    %v2112 = vsel %vm1984, %v1920, %v2048
    %v2113 = vsel %vm1985, %v1921, %v2049
    %v2114 = vsel %vm1986, %v1922, %v2050
    %v2115 = vsel %vm1987, %v1923, %v2051
    %v2116 = vsel %vm1988, %v1924, %v2052
    %v2117 = vsel %vm1989, %v1925, %v2053
    %v2118 = vsel %vm1990, %v1926, %v2054
    %v2119 = vsel %vm1991, %v1927, %v2055
    %v2120 = vsel %vm1992, %v1928, %v2056
    %v2121 = vsel %vm1993, %v1929, %v2057
    %v2122 = vsel %vm1994, %v1930, %v2058
    %v2123 = vsel %vm1995, %v1931, %v2059
    %v2124 = vsel %vm1996, %v1932, %v2060
    %v2125 = vsel %vm1997, %v1933, %v2061
    %v2126 = vsel %vm1998, %v1934, %v2062
    %v2127 = vsel %vm1999, %v1935, %v2063
    %v2128 = vld [vmem:[%s10] sm:$0xff]
    %v2129 = vld [vmem:[%s10 + $0x8] sm:$0xff]
    %v2130 = vld [vmem:[%s10 + $0x10] sm:$0xff]
    %v2131 = vld [vmem:[%s10 + $0x18] sm:$0xff]
    %v2132 = vld [vmem:[%s10 + $0x20] sm:$0xff]
    %v2133 = vld [vmem:[%s10 + $0x28] sm:$0xff]
    %v2134 = vld [vmem:[%s10 + $0x30] sm:$0xff]
    %v2135 = vld [vmem:[%s10 + $0x38] sm:$0xff]
    %v2136 = vld [vmem:[%s10 + $0x40] sm:$0xff]
    %v2137 = vld [vmem:[%s10 + $0x48] sm:$0xff]
    %v2138 = vld [vmem:[%s10 + $0x50] sm:$0xff]
    %v2139 = vld [vmem:[%s10 + $0x58] sm:$0xff]
    %v2140 = vld [vmem:[%s10 + $0x60] sm:$0xff]
    %v2141 = vld [vmem:[%s10 + $0x68] sm:$0xff]
    %v2142 = vld [vmem:[%s10 + $0x70] sm:$0xff]
    %v2143 = vld [vmem:[%s10 + $0x78] sm:$0xff]
    %v2144 = vld [vmem:[%s10 + $0x80] sm:$0xff]
    %v2145 = vld [vmem:[%s10 + $0x88] sm:$0xff]
    %v2146 = vld [vmem:[%s10 + $0x90] sm:$0xff]
    %v2147 = vld [vmem:[%s10 + $0x98] sm:$0xff]
    %v2148 = vld [vmem:[%s10 + $0xa0] sm:$0xff]
    %v2149 = vld [vmem:[%s10 + $0xa8] sm:$0xff]
    %v2150 = vld [vmem:[%s10 + $0xb0] sm:$0xff]
    %v2151 = vld [vmem:[%s10 + $0xb8] sm:$0xff]
    %v2152 = vld [vmem:[%s10 + $0xc0] sm:$0xff]
    %v2153 = vld [vmem:[%s10 + $0xc8] sm:$0xff]
    %v2154 = vld [vmem:[%s10 + $0xd0] sm:$0xff]
    %v2155 = vld [vmem:[%s10 + $0xd8] sm:$0xff]
    %v2156 = vld [vmem:[%s10 + $0xe0] sm:$0xff]
    %v2157 = vld [vmem:[%s10 + $0xe8] sm:$0xff]
    %v2158 = vld [vmem:[%s10 + $0xf0] sm:$0xff]
    %v2159 = vld [vmem:[%s10 + $0xf8] sm:$0xff]
    %v2160 = vld [vmem:[%s11] sm:$0x1]
    %v2162 = vlaneseq
    %v2163 = vshrl.u32 %v2162, 7
    %v2164 = vsub.s32 0, %v2163
    %v2165 = vrot.slane %v2160, %v2164
    %2167 = vmatprep.subr.mxu0 0.0
    %2168 = vmatpush1.msra.mxu0 %v2143
    %2169 = vmatprep.subr.mxu0 0.0
    %2170 = vmatpush1.msra.mxu0 %v2142
    %2171 = vmatprep.subr.mxu0 0.0
    %2172 = vmatpush1.msra.mxu0 %v2141
    %2173 = vmatprep.subr.mxu0 0.0
    %2174 = vmatpush1.msra.mxu0 %v2140
    %2175 = vmatprep.subr.mxu0 0.0
    %2176 = vmatpush1.msra.mxu0 %v2139
    %2177 = vmatprep.subr.mxu0 0.0
    %2178 = vmatpush1.msra.mxu0 %v2138
    %2179 = vmatprep.subr.mxu0 0.0
    %2180 = vmatpush1.msra.mxu0 %v2137
    %2181 = vmatprep.subr.mxu0 0.0
    %2182 = vmatpush1.msra.mxu0 %v2136
    %2183 = vmatprep.subr.mxu0 0.0
    %2184 = vmatpush1.msra.mxu0 %v2135
    %2185 = vmatprep.subr.mxu0 0.0
    %2186 = vmatpush1.msra.mxu0 %v2134
    %2187 = vmatprep.subr.mxu0 0.0
    %2188 = vmatpush1.msra.mxu0 %v2133
    %2189 = vmatprep.subr.mxu0 0.0
    %2190 = vmatpush1.msra.mxu0 %v2132
    %2191 = vmatprep.subr.mxu0 0.0
    %2192 = vmatpush1.msra.mxu0 %v2131
    %2193 = vmatprep.subr.mxu0 0.0
    %2194 = vmatpush1.msra.mxu0 %v2130
    %2195 = vmatprep.subr.mxu0 0.0
    %2196 = vmatpush1.msra.mxu0 %v2129
    %2197 = vmatprep.subr.mxu0 0.0
    %2198 = vmatpush1.msra.mxu0 %v2128
    %2199 = vmatprep.subr.mxu0 0.0
    %2200 = vmatpush2.msra.mxu0 %v2159
    %2201 = vmatprep.subr.mxu0 0.0
    %2202 = vmatpush2.msra.mxu0 %v2158
    %2203 = vmatprep.subr.mxu0 0.0
    %2204 = vmatpush2.msra.mxu0 %v2157
    %2205 = vmatprep.subr.mxu0 0.0
    %2206 = vmatpush2.msra.mxu0 %v2156
    %2207 = vmatprep.subr.mxu0 0.0
    %2208 = vmatpush2.msra.mxu0 %v2155
    %2209 = vmatprep.subr.mxu0 0.0
    %2210 = vmatpush2.msra.mxu0 %v2154
    %2211 = vmatprep.subr.mxu0 0.0
    %2212 = vmatpush2.msra.mxu0 %v2153
    %2213 = vmatprep.subr.mxu0 0.0
    %2214 = vmatpush2.msra.mxu0 %v2152
    %2215 = vmatprep.subr.mxu0 0.0
    %2216 = vmatpush2.msra.mxu0 %v2151
    %2217 = vmatprep.subr.mxu0 0.0
    %2218 = vmatpush2.msra.mxu0 %v2150
    %2219 = vmatprep.subr.mxu0 0.0
    %2220 = vmatpush2.msra.mxu0 %v2149
    %2221 = vmatprep.subr.mxu0 0.0
    %2222 = vmatpush2.msra.mxu0 %v2148
    %2223 = vmatprep.subr.mxu0 0.0
    %2224 = vmatpush2.msra.mxu0 %v2147
    %2225 = vmatprep.subr.mxu0 0.0
    %2226 = vmatpush2.msra.mxu0 %v2146
    %2227 = vmatprep.subr.mxu0 0.0
    %2228 = vmatpush2.msra.mxu0 %v2145
    %2229 = vmatprep.subr.mxu0 0.0
    %2230 = vmatpush2.msra.mxu0 %v2144
    %2231 = vmatprep.mubr.f32.mxu0 %v2065
    %2232 = vmatmul.mubr.f32.gmra.mxu0 %v2064
    %v2233 = vpop.f32.mrf.mxu0
    %v2234 = vadd.f32 %v2165, %v2233
    %v2235 = vpop.f32.mrf.mxu0
    %2236 = vmatprep.mubr.f32.mxu0 %v2067
    %2237 = vmatmul.mubr.f32.gmra.mxu0 %v2066
    %v2238 = vpop.f32.mrf.mxu0
    %v2239 = vadd.f32 %v2165, %v2238
    %v2240 = vpop.f32.mrf.mxu0
    %2241 = vmatprep.mubr.f32.mxu0 %v2069
    %2242 = vmatmul.mubr.f32.gmra.mxu0 %v2068
    %v2243 = vpop.f32.mrf.mxu0
    %v2244 = vadd.f32 %v2165, %v2243
    %v2245 = vpop.f32.mrf.mxu0
    %2246 = vmatprep.mubr.f32.mxu0 %v2071
    %2247 = vmatmul.mubr.f32.gmra.mxu0 %v2070
    %v2248 = vpop.f32.mrf.mxu0
    %v2249 = vadd.f32 %v2165, %v2248
    %v2250 = vpop.f32.mrf.mxu0
    %2251 = vmatprep.mubr.f32.mxu0 %v2073
    %2252 = vmatmul.mubr.f32.gmra.mxu0 %v2072
    %v2253 = vpop.f32.mrf.mxu0
    %v2254 = vadd.f32 %v2165, %v2253
    %v2255 = vpop.f32.mrf.mxu0
    %2256 = vmatprep.mubr.f32.mxu0 %v2075
    %2257 = vmatmul.mubr.f32.gmra.mxu0 %v2074
    %v2258 = vpop.f32.mrf.mxu0
    %v2259 = vadd.f32 %v2165, %v2258
    %v2260 = vpop.f32.mrf.mxu0
    %2261 = vmatprep.mubr.f32.mxu0 %v2077
    %2262 = vmatmul.mubr.f32.gmra.mxu0 %v2076
    %v2263 = vpop.f32.mrf.mxu0
    %v2264 = vadd.f32 %v2165, %v2263
    %v2265 = vpop.f32.mrf.mxu0
    %2266 = vmatprep.mubr.f32.mxu0 %v2079
    %2267 = vmatmul.mubr.f32.gmra.mxu0 %v2078
    %v2268 = vpop.f32.mrf.mxu0
    %v2269 = vadd.f32 %v2165, %v2268
    %v2270 = vpop.f32.mrf.mxu0
    %2271 = vmatprep.mubr.f32.mxu0 %v2081
    %2272 = vmatmul.mubr.f32.gmra.mxu0 %v2080
    %v2273 = vpop.f32.mrf.mxu0
    %v2274 = vadd.f32 %v2165, %v2273
    %v2275 = vpop.f32.mrf.mxu0
    %2276 = vmatprep.mubr.f32.mxu0 %v2083
    %2277 = vmatmul.mubr.f32.gmra.mxu0 %v2082
    %v2278 = vpop.f32.mrf.mxu0
    %v2279 = vadd.f32 %v2165, %v2278
    %v2280 = vpop.f32.mrf.mxu0
    %2281 = vmatprep.mubr.f32.mxu0 %v2085
    %2282 = vmatmul.mubr.f32.gmra.mxu0 %v2084
    %v2283 = vpop.f32.mrf.mxu0
    %v2284 = vadd.f32 %v2165, %v2283
    %v2285 = vpop.f32.mrf.mxu0
    %2286 = vmatprep.mubr.f32.mxu0 %v2087
    %2287 = vmatmul.mubr.f32.gmra.mxu0 %v2086
    %v2288 = vpop.f32.mrf.mxu0
    %v2289 = vadd.f32 %v2165, %v2288
    %v2290 = vpop.f32.mrf.mxu0
    %2291 = vmatprep.mubr.f32.mxu0 %v2089
    %2292 = vmatmul.mubr.f32.gmra.mxu0 %v2088
    %v2293 = vpop.f32.mrf.mxu0
    %v2294 = vadd.f32 %v2165, %v2293
    %v2295 = vpop.f32.mrf.mxu0
    %2296 = vmatprep.mubr.f32.mxu0 %v2091
    %2297 = vmatmul.mubr.f32.gmra.mxu0 %v2090
    %v2298 = vpop.f32.mrf.mxu0
    %v2299 = vadd.f32 %v2165, %v2298
    %v2300 = vpop.f32.mrf.mxu0
    %2301 = vmatprep.mubr.f32.mxu0 %v2093
    %2302 = vmatmul.mubr.f32.gmra.mxu0 %v2092
    %v2303 = vpop.f32.mrf.mxu0
    %v2304 = vadd.f32 %v2165, %v2303
    %v2305 = vpop.f32.mrf.mxu0
    %2306 = vmatprep.mubr.f32.mxu0 %v2095
    %2307 = vmatmul.mubr.f32.gmra.mxu0 %v2094
    %v2308 = vpop.f32.mrf.mxu0
    %v2309 = vadd.f32 %v2165, %v2308
    %v2310 = vpop.f32.mrf.mxu0
    %2311 = vmatprep.mubr.f32.mxu0 %v2097
    %2312 = vmatmul.mubr.f32.gmra.mxu0 %v2096
    %v2313 = vpop.f32.mrf.mxu0
    %v2314 = vadd.f32 %v2165, %v2313
    %v2315 = vpop.f32.mrf.mxu0
    %2316 = vmatprep.mubr.f32.mxu0 %v2099
    %2317 = vmatmul.mubr.f32.gmra.mxu0 %v2098
    %v2318 = vpop.f32.mrf.mxu0
    %v2319 = vadd.f32 %v2165, %v2318
    %v2320 = vpop.f32.mrf.mxu0
    %2321 = vmatprep.mubr.f32.mxu0 %v2101
    %2322 = vmatmul.mubr.f32.gmra.mxu0 %v2100
    %v2323 = vpop.f32.mrf.mxu0
    %v2324 = vadd.f32 %v2165, %v2323
    %v2325 = vpop.f32.mrf.mxu0
    %2326 = vmatprep.mubr.f32.mxu0 %v2103
    %2327 = vmatmul.mubr.f32.gmra.mxu0 %v2102
    %v2328 = vpop.f32.mrf.mxu0
    %v2329 = vadd.f32 %v2165, %v2328
    %v2330 = vpop.f32.mrf.mxu0
    %2331 = vmatprep.mubr.f32.mxu0 %v2105
    %2332 = vmatmul.mubr.f32.gmra.mxu0 %v2104
    %v2333 = vpop.f32.mrf.mxu0
    %v2334 = vadd.f32 %v2165, %v2333
    %v2335 = vpop.f32.mrf.mxu0
    %2336 = vmatprep.mubr.f32.mxu0 %v2107
    %2337 = vmatmul.mubr.f32.gmra.mxu0 %v2106
    %v2338 = vpop.f32.mrf.mxu0
    %v2339 = vadd.f32 %v2165, %v2338
    %v2340 = vpop.f32.mrf.mxu0
    %2341 = vmatprep.mubr.f32.mxu0 %v2109
    %2342 = vmatmul.mubr.f32.gmra.mxu0 %v2108
    %v2343 = vpop.f32.mrf.mxu0
    %v2344 = vadd.f32 %v2165, %v2343
    %v2345 = vpop.f32.mrf.mxu0
    %2346 = vmatprep.mubr.f32.mxu0 %v2111
    %2347 = vmatmul.mubr.f32.gmra.mxu0 %v2110
    %v2348 = vpop.f32.mrf.mxu0
    %v2349 = vadd.f32 %v2165, %v2348
    %v2350 = vpop.f32.mrf.mxu0
    %2351 = vmatprep.mubr.f32.mxu0 %v2113
    %2352 = vmatmul.mubr.f32.gmra.mxu0 %v2112
    %v2353 = vpop.f32.mrf.mxu0
    %v2354 = vadd.f32 %v2165, %v2353
    %v2355 = vpop.f32.mrf.mxu0
    %2356 = vmatprep.mubr.f32.mxu0 %v2115
    %2357 = vmatmul.mubr.f32.gmra.mxu0 %v2114
    %v2358 = vpop.f32.mrf.mxu0
    %v2359 = vadd.f32 %v2165, %v2358
    %v2360 = vpop.f32.mrf.mxu0
    %2361 = vmatprep.mubr.f32.mxu0 %v2117
    %2362 = vmatmul.mubr.f32.gmra.mxu0 %v2116
    %v2363 = vpop.f32.mrf.mxu0
    %v2364 = vadd.f32 %v2165, %v2363
    %v2365 = vpop.f32.mrf.mxu0
    %2366 = vmatprep.mubr.f32.mxu0 %v2119
    %2367 = vmatmul.mubr.f32.gmra.mxu0 %v2118
    %v2368 = vpop.f32.mrf.mxu0
    %v2369 = vadd.f32 %v2165, %v2368
    %v2370 = vpop.f32.mrf.mxu0
    %2371 = vmatprep.mubr.f32.mxu0 %v2121
    %2372 = vmatmul.mubr.f32.gmra.mxu0 %v2120
    %v2373 = vpop.f32.mrf.mxu0
    %v2374 = vadd.f32 %v2165, %v2373
    %v2375 = vpop.f32.mrf.mxu0
    %2376 = vmatprep.mubr.f32.mxu0 %v2123
    %2377 = vmatmul.mubr.f32.gmra.mxu0 %v2122
    %v2378 = vpop.f32.mrf.mxu0
    %v2379 = vadd.f32 %v2165, %v2378
    %v2380 = vpop.f32.mrf.mxu0
    %2381 = vmatprep.mubr.f32.mxu0 %v2125
    %2382 = vmatmul.mubr.f32.gmra.mxu0 %v2124
    %v2383 = vpop.f32.mrf.mxu0
    %v2384 = vadd.f32 %v2165, %v2383
    %v2385 = vpop.f32.mrf.mxu0
    %2386 = vmatprep.mubr.f32.mxu0 %v2127
    %2387 = vmatmul.mubr.f32.gmra.mxu0 %v2126
    %v2388 = vpop.f32.mrf.mxu0
    %v2389 = vadd.f32 %v2165, %v2388
    %v2390 = vpop.f32.mrf.mxu0
    %2391 = vdwg.mxu0
    %vm2392 = vcmask 23552
    %2393 = vst.msk [vmem:[%s12] sm:$0xff] %vm2392, %v2234
    %2394 = vst.msk [vmem:[%s12 + $0x8] sm:$0xff] %vm2392, %v2239
    %2395 = vst.msk [vmem:[%s12 + $0x10] sm:$0xff] %vm2392, %v2244
    %2396 = vst.msk [vmem:[%s12 + $0x18] sm:$0xff] %vm2392, %v2249
    %2397 = vst.msk [vmem:[%s12 + $0x20] sm:$0xff] %vm2392, %v2254
    %2398 = vst.msk [vmem:[%s12 + $0x28] sm:$0xff] %vm2392, %v2259
    %2399 = vst.msk [vmem:[%s12 + $0x30] sm:$0xff] %vm2392, %v2264
    %2400 = vst.msk [vmem:[%s12 + $0x38] sm:$0xff] %vm2392, %v2269
    %2401 = vst.msk [vmem:[%s12 + $0x40] sm:$0xff] %vm2392, %v2274
    %2402 = vst.msk [vmem:[%s12 + $0x48] sm:$0xff] %vm2392, %v2279
    %2403 = vst.msk [vmem:[%s12 + $0x50] sm:$0xff] %vm2392, %v2284
    %2404 = vst.msk [vmem:[%s12 + $0x58] sm:$0xff] %vm2392, %v2289
    %2405 = vst.msk [vmem:[%s12 + $0x60] sm:$0xff] %vm2392, %v2294
    %2406 = vst.msk [vmem:[%s12 + $0x68] sm:$0xff] %vm2392, %v2299
    %2407 = vst.msk [vmem:[%s12 + $0x70] sm:$0xff] %vm2392, %v2304
    %2408 = vst.msk [vmem:[%s12 + $0x78] sm:$0xff] %vm2392, %v2309
    %2409 = vst.msk [vmem:[%s12 + $0x80] sm:$0xff] %vm2392, %v2314
    %2410 = vst.msk [vmem:[%s12 + $0x88] sm:$0xff] %vm2392, %v2319
    %2411 = vst.msk [vmem:[%s12 + $0x90] sm:$0xff] %vm2392, %v2324
    %2412 = vst.msk [vmem:[%s12 + $0x98] sm:$0xff] %vm2392, %v2329
    %2413 = vst.msk [vmem:[%s12 + $0xa0] sm:$0xff] %vm2392, %v2334
    %2414 = vst.msk [vmem:[%s12 + $0xa8] sm:$0xff] %vm2392, %v2339
    %2415 = vst.msk [vmem:[%s12 + $0xb0] sm:$0xff] %vm2392, %v2344
    %2416 = vst.msk [vmem:[%s12 + $0xb8] sm:$0xff] %vm2392, %v2349
    %2417 = vst.msk [vmem:[%s12 + $0xc0] sm:$0xff] %vm2392, %v2354
    %2418 = vst.msk [vmem:[%s12 + $0xc8] sm:$0xff] %vm2392, %v2359
    %2419 = vst.msk [vmem:[%s12 + $0xd0] sm:$0xff] %vm2392, %v2364
    %2420 = vst.msk [vmem:[%s12 + $0xd8] sm:$0xff] %vm2392, %v2369
    %2421 = vst.msk [vmem:[%s12 + $0xe0] sm:$0xff] %vm2392, %v2374
    %2422 = vst.msk [vmem:[%s12 + $0xe8] sm:$0xff] %vm2392, %v2379
    %2423 = vst.msk [vmem:[%s12 + $0xf0] sm:$0xff] %vm2392, %v2384
    %2424 = vst.msk [vmem:[%s12 + $0xf8] sm:$0xff] %vm2392, %v2389
    // Predicated region
    $region66: #{tpu_custom_call.1} parent=1 // pred_check
      _
    $region67: #{tpu_custom_call.1} parent=1 // pred_check_branch
      %2426 = sbr.rel (0) target = $region69
    $region68: #{tpu_custom_call.1} parent=1 // pred_region
      _
    $region69: #{tpu_custom_call.1} parent=1 // pred_fallthru
      _
    // Predicated region
    $region70: #{tpu_custom_call.1} parent=1 // pred_check
      _
    $region71: #{tpu_custom_call.1} parent=1 // pred_check_branch
      %2428 = sbr.rel (0) target = $region73
    $region72: #{tpu_custom_call.1} parent=1 // pred_region
      _
    $region73: #{tpu_custom_call.1} parent=1 // pred_fallthru
      _
    %2429 = vsyncpa [#allocation3], 1
    %2430 = vsyncpa [#allocation5], 1
    %2431 = vsyncpa [#allocation8], 1

</llo_original>
